<compile_context>
chip_gen: v7x
topology: tpu7x:2x2x1
jax: 0.10.0
libtpu: 0.0.40
codegen_flags: <defaults>
</compile_context>

<pallas_src>
import jax
import jax.numpy as jnp
from jax import lax
from jax.experimental import pallas as pl
from jax.experimental.pallas import tpu as pltpu

_TN = (((0,), (0,)), ((), ()))  # contract dim 0 of both operands == lhs^T @ rhs


# --------------------------- fused forward kernel ---------------------------
def _fused_diffpool_kernel(a_ref, x_ref, w1e_ref, w1p_ref, w2e_ref, w2p_ref,
                           w3e_ref, wl_ref, bl_ref, o_ref):
    a = a_ref[0]                      # (N, N)
    x = x_ref[0]                      # (N, 128)  (F_in zero-padded)

    def softmax_rows(p):
        p = p - jnp.max(p, axis=-1, keepdims=True)
        e = jnp.exp(p)
        inv = pl.reciprocal(jnp.sum(e, axis=-1, keepdims=True), approx=True)
        return e * inv

    # ---------------- DiffPool layer 1: N nodes -> 32 clusters --------------
    ax = jnp.dot(a, x, preferred_element_type=jnp.float32)                   # (N,128)
    z1 = jnp.dot(ax, w1e_ref[...], preferred_element_type=jnp.float32)       # (N,64)
    s1 = softmax_rows(
        jnp.dot(ax, w1p_ref[...], preferred_element_type=jnp.float32))       # (N,32)
    x1 = lax.dot_general(s1, z1, _TN, preferred_element_type=jnp.float32)    # (32,64)
    a1 = lax.dot_general(
        s1, jnp.dot(a, s1, preferred_element_type=jnp.float32), _TN,
        preferred_element_type=jnp.float32)                                  # (32,32)

    # ---------------- DiffPool layer 2: 32 -> 16 clusters -------------------
    ax2 = jnp.dot(a1, x1, preferred_element_type=jnp.float32)                # (32,64)
    z2 = jnp.dot(ax2, w2e_ref[...], preferred_element_type=jnp.float32)      # (32,64)
    s2 = softmax_rows(
        jnp.dot(ax2, w2p_ref[...], preferred_element_type=jnp.float32))      # (32,16)
    x2 = lax.dot_general(s2, z2, _TN, preferred_element_type=jnp.float32)    # (16,64)
    a2 = lax.dot_general(
        s2, jnp.dot(a1, s2, preferred_element_type=jnp.float32), _TN,
        preferred_element_type=jnp.float32)                                  # (16,16)

    # --------- DiffPool layer 3: 16 -> 1 cluster (degenerate softmax) -------
    # softmax over a single cluster == 1.0 exactly, so S^T @ Z is a column
    # sum and the 1x1 A_new is never used after this point.
    z3 = jnp.dot(jnp.dot(a2, x2, preferred_element_type=jnp.float32),
                 w3e_ref[...], preferred_element_type=jnp.float32)           # (16,64)
    x3 = jnp.sum(z3, axis=0, keepdims=True)                                  # (1,64)

    # ----------------- final nn.Linear(64, 1) as a reduction ----------------
    y = jnp.sum(x3 * wl_ref[...], axis=-1, keepdims=True) + bl_ref[...]      # (1,1)

    # Lane-dense output slab (unmasked store); wrapper slices column 0.
    o_ref[0] = jnp.broadcast_to(y, (1, 128))


def _fused_forward_call(A, x_pad, prep):
    B, N, _ = A.shape
    Fp = x_pad.shape[-1]               # 128
    D = prep["w1e"].shape[-1]          # 64
    K1 = prep["w1p"].shape[-1]         # 32
    K2 = prep["w2p"].shape[-1]         # 16
    out = pl.pallas_call(
        _fused_diffpool_kernel,
        out_shape=jax.ShapeDtypeStruct((B, 1, 128), jnp.float32),
        grid=(B,),
        in_specs=[
            pl.BlockSpec((1, N, N), lambda b: (b, 0, 0)),
            pl.BlockSpec((1, N, Fp), lambda b: (b, 0, 0)),
            pl.BlockSpec((Fp, D), lambda b: (0, 0)),
            pl.BlockSpec((Fp, K1), lambda b: (0, 0)),
            pl.BlockSpec((D, D), lambda b: (0, 0)),
            pl.BlockSpec((D, K2), lambda b: (0, 0)),
            pl.BlockSpec((D, D), lambda b: (0, 0)),
            pl.BlockSpec((1, D), lambda b: (0, 0)),
            pl.BlockSpec((1, 1), lambda b: (0, 0)),
        ],
        out_specs=pl.BlockSpec((1, 1, 128), lambda b: (b, 0, 0)),
        compiler_params=pltpu.CompilerParams(dimension_semantics=("parallel",)),
    )(A, x_pad, prep["w1e"], prep["w1p"], prep["w2e"], prep["w2p"],
      prep["w3e"], prep["wl"], prep["bl"])
    return out[:, 0, :1]               # (B, 1)


# ------------------------------ parameters ----------------------------------
def init_params(key):
    """Module-shaped parameters (PyTorch layouts)."""
    ks = jax.random.split(key, 9)
    scale = 0.1
    return {
        # DiffPool 1: in 121 -> embed 64, pool 32 (bias=False)
        "w1e": scale * jax.random.normal(ks[0], (121, 64), jnp.float32),
        "w1p": scale * jax.random.normal(ks[1], (121, 32), jnp.float32),
        # DiffPool 2: in 64 -> embed 64, pool 16 (bias=False)
        "w2e": scale * jax.random.normal(ks[2], (64, 64), jnp.float32),
        "w2p": scale * jax.random.normal(ks[3], (64, 16), jnp.float32),
        # DiffPool 3: in 64 -> embed 64, pool 1 (bias=False)
        "w3e": scale * jax.random.normal(ks[4], (64, 64), jnp.float32),
        "w3p": scale * jax.random.normal(ks[5], (64, 1), jnp.float32),
        # Final Linear(64, 1)  (PyTorch layout: W (out, in), b (out,))
        "wl": scale * jax.random.normal(ks[6], (1, 64), jnp.float32),
        "bl": scale * jax.random.normal(ks[7], (1,), jnp.float32),
    }


def prepare_params(params, pad_to=128):
    """One-time host-side prep: pad F_in 121->128, pre-shape bias.

    w3p is dropped: with a single output cluster softmax(.) == 1.0 exactly, so
    the layer-3 assignment matrix never depends on it.
    """
    f_in = params["w1e"].shape[0]
    pad = pad_to - f_in
    return {
        "w1e": jnp.pad(params["w1e"], ((0, pad), (0, 0))),
        "w1p": jnp.pad(params["w1p"], ((0, pad), (0, 0))),
        "w2e": params["w2e"],
        "w2p": params["w2p"],
        "w3e": params["w3e"],
        "wl": params["wl"],                      # (1, 64) consumed as a reduction
        "bl": params["bl"].reshape(1, 1),
    }


# ------------------------------ full forward --------------------------------
def toy_diffpool_forward(prep, A, x, masks):
    # masks accepted but unused in the original forward().
    del masks
    f_in = x.shape[-1]
    f_pad = prep["w1e"].shape[0]                 # 128
    x_pad = jnp.pad(x, ((0, 0), (0, 0), (0, f_pad - f_in)))
    return _fused_forward_call(A, x_pad, prep)   # (B, 1)


if __name__ == "__main__":
    key = jax.random.PRNGKey(0)
    k_p, k_a, k_x = jax.random.split(key, 3)

    B, N, F = 2, 16, 121
    params = init_params(k_p)
    prep = prepare_params(params)

    # Symmetric "adjacency-like" matrix and node features.
    A_raw = jax.random.uniform(k_a, (B, N, N), jnp.float32)
    A = 0.5 * (A_raw + jnp.swapaxes(A_raw, -1, -2))
    x = jax.random.normal(k_x, (B, N, F), jnp.float32)
    masks = jnp.ones((B, N), jnp.float32)  # unused in forward

    fwd = jax.jit(toy_diffpool_forward)
    out = fwd(prep, A, x, masks)
    out = jax.block_until_ready(out)
    assert out.shape == (B, 1)
    print("KERNEL_OK")
</pallas_src>

<mosaic_0001>
module attributes {stable_mosaic.version = 11 : i64} {
  func.func @_fused_diffpool_kernel(%arg0: i32, %arg1: memref<1x16x16xf32, #tpu.memory_space<vmem>>, %arg2: memref<1x16x128xf32, #tpu.memory_space<vmem>>, %arg3: memref<128x64xf32, #tpu.memory_space<vmem>>, %arg4: memref<128x32xf32, #tpu.memory_space<vmem>>, %arg5: memref<64x64xf32, #tpu.memory_space<vmem>>, %arg6: memref<64x16xf32, #tpu.memory_space<vmem>>, %arg7: memref<64x64xf32, #tpu.memory_space<vmem>>, %arg8: memref<1x64xf32, #tpu.memory_space<vmem>>, %arg9: memref<1x1xf32, #tpu.memory_space<vmem>>, %arg10: memref<1x1x128xf32, #tpu.memory_space<vmem>>) attributes {dimension_semantics = [#tpu.dimension_semantics<parallel>], iteration_bounds = array<i64: 2>, scalar_prefetch = 0 : i64, scratch_operands = 0 : i64, tpu.core_type = #tpu.core_type<tc>, window_params = [{transform_indices = @transform_0, window_bounds = array<i64: 1, 16, 16>}, {transform_indices = @transform_1, window_bounds = array<i64: 1, 16, 128>}, {pipeline_mode = #tpu.pipeline_mode<synchronous>, transform_indices = @transform_2, window_bounds = array<i64: 128, 64>}, {pipeline_mode = #tpu.pipeline_mode<synchronous>, transform_indices = @transform_3, window_bounds = array<i64: 128, 32>}, {pipeline_mode = #tpu.pipeline_mode<synchronous>, transform_indices = @transform_4, window_bounds = array<i64: 64, 64>}, {pipeline_mode = #tpu.pipeline_mode<synchronous>, transform_indices = @transform_5, window_bounds = array<i64: 64, 16>}, {pipeline_mode = #tpu.pipeline_mode<synchronous>, transform_indices = @transform_6, window_bounds = array<i64: 64, 64>}, {pipeline_mode = #tpu.pipeline_mode<synchronous>, transform_indices = @transform_7, window_bounds = array<i64: 1, 64>}, {pipeline_mode = #tpu.pipeline_mode<synchronous>, transform_indices = @transform_8, window_bounds = array<i64: 1, 1>}, {transform_indices = @transform_9, window_bounds = array<i64: 1, 1, 128>}]} {
    %c0 = arith.constant 0 : index
    %c0_0 = arith.constant 0 : index
    %c0_1 = arith.constant 0 : index
    %0 = vector.load %arg1[%c0, %c0_0, %c0_1] : memref<1x16x16xf32, #tpu.memory_space<vmem>>, vector<1x16x16xf32>
    %1 = vector.shape_cast %0 : vector<1x16x16xf32> to vector<16x16xf32>
    %c0_2 = arith.constant 0 : index
    %c0_3 = arith.constant 0 : index
    %c0_4 = arith.constant 0 : index
    %2 = vector.load %arg2[%c0_2, %c0_3, %c0_4] : memref<1x16x128xf32, #tpu.memory_space<vmem>>, vector<1x16x128xf32>
    %3 = vector.shape_cast %2 : vector<1x16x128xf32> to vector<16x128xf32>
    %cst = arith.constant dense<0.000000e+00> : vector<16x128xf32>
    %4 = tpu.matmul %1, %3, %cst {dimension_numbers = #tpu.dot_dimension_numbers<[1], [0], [0], [1], [0, 0, 1, 1], [], []>} : vector<16x16xf32>, vector<16x128xf32>, vector<16x128xf32> -> vector<16x128xf32>
    %c0_5 = arith.constant 0 : index
    %c0_6 = arith.constant 0 : index
    %5 = vector.load %arg3[%c0_5, %c0_6] : memref<128x64xf32, #tpu.memory_space<vmem>>, vector<128x64xf32>
    %cst_7 = arith.constant dense<0.000000e+00> : vector<16x64xf32>
    %6 = tpu.matmul %4, %5, %cst_7 {dimension_numbers = #tpu.dot_dimension_numbers<[1], [0], [0], [1], [0, 0, 1, 1], [], []>} : vector<16x128xf32>, vector<128x64xf32>, vector<16x64xf32> -> vector<16x64xf32>
    %c0_8 = arith.constant 0 : index
    %c0_9 = arith.constant 0 : index
    %7 = vector.load %arg4[%c0_8, %c0_9] : memref<128x32xf32, #tpu.memory_space<vmem>>, vector<128x32xf32>
    %cst_10 = arith.constant dense<0.000000e+00> : vector<16x32xf32>
    %8 = tpu.matmul %4, %7, %cst_10 {dimension_numbers = #tpu.dot_dimension_numbers<[1], [0], [0], [1], [0, 0, 1, 1], [], []>} : vector<16x128xf32>, vector<128x32xf32>, vector<16x32xf32> -> vector<16x32xf32>
    %cst_11 = arith.constant dense<0xFF800000> : vector<16xf32>
    %9 = vector.multi_reduction <maximumf>, %8, %cst_11 [1] : vector<16x32xf32> to vector<16xf32>
    %10 = vector.shape_cast %9 : vector<16xf32> to vector<16x1xf32>
    %11 = vector.broadcast %10 : vector<16x1xf32> to vector<16x32xf32>
    %12 = arith.subf %8, %11 : vector<16x32xf32>
    %13 = math.exp %12 : vector<16x32xf32>
    %cst_12 = arith.constant dense<0.000000e+00> : vector<16xf32>
    %14 = vector.multi_reduction <add>, %13, %cst_12 [1] : vector<16x32xf32> to vector<16xf32>
    %15 = vector.shape_cast %14 : vector<16xf32> to vector<16x1xf32>
    %16 = tpu.reciprocal %15 {approx = true} : vector<16x1xf32> -> vector<16x1xf32>
    %17 = vector.broadcast %16 : vector<16x1xf32> to vector<16x32xf32>
    %18 = arith.mulf %13, %17 : vector<16x32xf32>
    %cst_13 = arith.constant dense<0.000000e+00> : vector<32x64xf32>
    %19 = tpu.matmul %18, %6, %cst_13 {dimension_numbers = #tpu.dot_dimension_numbers<[0], [0], [1], [1], [0, 1, 1, 1], [], []>} : vector<16x32xf32>, vector<16x64xf32>, vector<32x64xf32> -> vector<32x64xf32>
    %cst_14 = arith.constant dense<0.000000e+00> : vector<16x32xf32>
    %20 = tpu.matmul %1, %18, %cst_14 {dimension_numbers = #tpu.dot_dimension_numbers<[1], [0], [0], [1], [0, 0, 1, 1], [], []>} : vector<16x16xf32>, vector<16x32xf32>, vector<16x32xf32> -> vector<16x32xf32>
    %cst_15 = arith.constant dense<0.000000e+00> : vector<32x32xf32>
    %21 = tpu.matmul %18, %20, %cst_15 {dimension_numbers = #tpu.dot_dimension_numbers<[0], [0], [1], [1], [0, 1, 1, 1], [], []>} : vector<16x32xf32>, vector<16x32xf32>, vector<32x32xf32> -> vector<32x32xf32>
    %cst_16 = arith.constant dense<0.000000e+00> : vector<32x64xf32>
    %22 = tpu.matmul %21, %19, %cst_16 {dimension_numbers = #tpu.dot_dimension_numbers<[1], [0], [0], [1], [0, 0, 1, 1], [], []>} : vector<32x32xf32>, vector<32x64xf32>, vector<32x64xf32> -> vector<32x64xf32>
    %c0_17 = arith.constant 0 : index
    %c0_18 = arith.constant 0 : index
    %23 = vector.load %arg5[%c0_17, %c0_18] : memref<64x64xf32, #tpu.memory_space<vmem>>, vector<64x64xf32>
    %cst_19 = arith.constant dense<0.000000e+00> : vector<32x64xf32>
    %24 = tpu.matmul %22, %23, %cst_19 {dimension_numbers = #tpu.dot_dimension_numbers<[1], [0], [0], [1], [0, 0, 1, 1], [], []>} : vector<32x64xf32>, vector<64x64xf32>, vector<32x64xf32> -> vector<32x64xf32>
    %c0_20 = arith.constant 0 : index
    %c0_21 = arith.constant 0 : index
    %25 = vector.load %arg6[%c0_20, %c0_21] : memref<64x16xf32, #tpu.memory_space<vmem>>, vector<64x16xf32>
    %cst_22 = arith.constant dense<0.000000e+00> : vector<32x16xf32>
    %26 = tpu.matmul %22, %25, %cst_22 {dimension_numbers = #tpu.dot_dimension_numbers<[1], [0], [0], [1], [0, 0, 1, 1], [], []>} : vector<32x64xf32>, vector<64x16xf32>, vector<32x16xf32> -> vector<32x16xf32>
    %cst_23 = arith.constant dense<0xFF800000> : vector<32xf32>
    %27 = vector.multi_reduction <maximumf>, %26, %cst_23 [1] : vector<32x16xf32> to vector<32xf32>
    %28 = vector.shape_cast %27 : vector<32xf32> to vector<32x1xf32>
    %29 = vector.broadcast %28 : vector<32x1xf32> to vector<32x16xf32>
    %30 = arith.subf %26, %29 : vector<32x16xf32>
    %31 = math.exp %30 : vector<32x16xf32>
    %cst_24 = arith.constant dense<0.000000e+00> : vector<32xf32>
    %32 = vector.multi_reduction <add>, %31, %cst_24 [1] : vector<32x16xf32> to vector<32xf32>
    %33 = vector.shape_cast %32 : vector<32xf32> to vector<32x1xf32>
    %34 = tpu.reciprocal %33 {approx = true} : vector<32x1xf32> -> vector<32x1xf32>
    %35 = vector.broadcast %34 : vector<32x1xf32> to vector<32x16xf32>
    %36 = arith.mulf %31, %35 : vector<32x16xf32>
    %cst_25 = arith.constant dense<0.000000e+00> : vector<16x64xf32>
    %37 = tpu.matmul %36, %24, %cst_25 {dimension_numbers = #tpu.dot_dimension_numbers<[0], [0], [1], [1], [0, 1, 1, 1], [], []>} : vector<32x16xf32>, vector<32x64xf32>, vector<16x64xf32> -> vector<16x64xf32>
    %cst_26 = arith.constant dense<0.000000e+00> : vector<32x16xf32>
    %38 = tpu.matmul %21, %36, %cst_26 {dimension_numbers = #tpu.dot_dimension_numbers<[1], [0], [0], [1], [0, 0, 1, 1], [], []>} : vector<32x32xf32>, vector<32x16xf32>, vector<32x16xf32> -> vector<32x16xf32>
    %cst_27 = arith.constant dense<0.000000e+00> : vector<16x16xf32>
    %39 = tpu.matmul %36, %38, %cst_27 {dimension_numbers = #tpu.dot_dimension_numbers<[0], [0], [1], [1], [0, 1, 1, 1], [], []>} : vector<32x16xf32>, vector<32x16xf32>, vector<16x16xf32> -> vector<16x16xf32>
    %cst_28 = arith.constant dense<0.000000e+00> : vector<16x64xf32>
    %40 = tpu.matmul %39, %37, %cst_28 {dimension_numbers = #tpu.dot_dimension_numbers<[1], [0], [0], [1], [0, 0, 1, 1], [], []>} : vector<16x16xf32>, vector<16x64xf32>, vector<16x64xf32> -> vector<16x64xf32>
    %c0_29 = arith.constant 0 : index
    %c0_30 = arith.constant 0 : index
    %41 = vector.load %arg7[%c0_29, %c0_30] : memref<64x64xf32, #tpu.memory_space<vmem>>, vector<64x64xf32>
    %cst_31 = arith.constant dense<0.000000e+00> : vector<16x64xf32>
    %42 = tpu.matmul %40, %41, %cst_31 {dimension_numbers = #tpu.dot_dimension_numbers<[1], [0], [0], [1], [0, 0, 1, 1], [], []>} : vector<16x64xf32>, vector<64x64xf32>, vector<16x64xf32> -> vector<16x64xf32>
    %cst_32 = arith.constant dense<0.000000e+00> : vector<64xf32>
    %43 = vector.multi_reduction <add>, %42, %cst_32 [0] : vector<16x64xf32> to vector<64xf32>
    %44 = vector.shape_cast %43 : vector<64xf32> to vector<1x64xf32>
    %c0_33 = arith.constant 0 : index
    %c0_34 = arith.constant 0 : index
    %45 = vector.load %arg8[%c0_33, %c0_34] : memref<1x64xf32, #tpu.memory_space<vmem>>, vector<1x64xf32>
    %46 = arith.mulf %44, %45 : vector<1x64xf32>
    %cst_35 = arith.constant dense<0.000000e+00> : vector<1xf32>
    %47 = vector.multi_reduction <add>, %46, %cst_35 [1] : vector<1x64xf32> to vector<1xf32>
    %48 = vector.shape_cast %47 : vector<1xf32> to vector<1x1xf32>
    %c0_36 = arith.constant 0 : index
    %c0_37 = arith.constant 0 : index
    %49 = vector.load %arg9[%c0_36, %c0_37] : memref<1x1xf32, #tpu.memory_space<vmem>>, vector<1x1xf32>
    %50 = arith.addf %48, %49 : vector<1x1xf32>
    %51 = vector.shape_cast %50 : vector<1x1xf32> to vector<1x1xf32>
    %52 = vector.broadcast %51 : vector<1x1xf32> to vector<1x128xf32>
    %c0_38 = arith.constant 0 : index
    %c0_39 = arith.constant 0 : index
    %c0_40 = arith.constant 0 : index
    %53 = vector.load %arg10[%c0_38, %c0_39, %c0_40] : memref<1x1x128xf32, #tpu.memory_space<vmem>>, vector<1x1x128xf32>
    %54 = vector.shape_cast %53 : vector<1x1x128xf32> to vector<1x128xf32>
    %55 = vector.shape_cast %52 : vector<1x128xf32> to vector<1x1x128xf32>
    tpu.vector_store %arg10[%c0_38, %c0_39, %c0_40], %55 {strides = array<i32>} : memref<1x1x128xf32, #tpu.memory_space<vmem>>, vector<1x1x128xf32>,
    return
  }
  func.func @transform_0(%arg0: i32) -> (i32, i32, i32) {
    %c0_i32 = arith.constant 0 : i32
    %c0_i32_0 = arith.constant 0 : i32
    %c0_i32_1 = arith.constant 0 : i32
    return %arg0, %c0_i32, %c0_i32_0 : i32, i32, i32
  }
  func.func @transform_1(%arg0: i32) -> (i32, i32, i32) {
    %c0_i32 = arith.constant 0 : i32
    %c0_i32_0 = arith.constant 0 : i32
    %c0_i32_1 = arith.constant 0 : i32
    return %arg0, %c0_i32, %c0_i32_0 : i32, i32, i32
  }
  func.func @transform_2(%arg0: i32) -> (i32, i32) {
    %c0_i32 = arith.constant 0 : i32
    %c0_i32_0 = arith.constant 0 : i32
    %c0_i32_1 = arith.constant 0 : i32
    return %c0_i32, %c0_i32_0 : i32, i32
  }
  func.func @transform_3(%arg0: i32) -> (i32, i32) {
    %c0_i32 = arith.constant 0 : i32
    %c0_i32_0 = arith.constant 0 : i32
    %c0_i32_1 = arith.constant 0 : i32
    return %c0_i32, %c0_i32_0 : i32, i32
  }
  func.func @transform_4(%arg0: i32) -> (i32, i32) {
    %c0_i32 = arith.constant 0 : i32
    %c0_i32_0 = arith.constant 0 : i32
    %c0_i32_1 = arith.constant 0 : i32
    return %c0_i32, %c0_i32_0 : i32, i32
  }
  func.func @transform_5(%arg0: i32) -> (i32, i32) {
    %c0_i32 = arith.constant 0 : i32
    %c0_i32_0 = arith.constant 0 : i32
    %c0_i32_1 = arith.constant 0 : i32
    return %c0_i32, %c0_i32_0 : i32, i32
  }
  func.func @transform_6(%arg0: i32) -> (i32, i32) {
    %c0_i32 = arith.constant 0 : i32
    %c0_i32_0 = arith.constant 0 : i32
    %c0_i32_1 = arith.constant 0 : i32
    return %c0_i32, %c0_i32_0 : i32, i32
  }
  func.func @transform_7(%arg0: i32) -> (i32, i32) {
    %c0_i32 = arith.constant 0 : i32
    %c0_i32_0 = arith.constant 0 : i32
    %c0_i32_1 = arith.constant 0 : i32
    return %c0_i32, %c0_i32_0 : i32, i32
  }
  func.func @transform_8(%arg0: i32) -> (i32, i32) {
    %c0_i32 = arith.constant 0 : i32
    %c0_i32_0 = arith.constant 0 : i32
    %c0_i32_1 = arith.constant 0 : i32
    return %c0_i32, %c0_i32_0 : i32, i32
  }
  func.func @transform_9(%arg0: i32) -> (i32, i32, i32) {
    %c0_i32 = arith.constant 0 : i32
    %c0_i32_0 = arith.constant 0 : i32
    %c0_i32_1 = arith.constant 0 : i32
    return %arg0, %c0_i32, %c0_i32_0 : i32, i32, i32
  }
}

</mosaic_0001>

<llo_original>
// kernel: toy_diffpool_forward.1
$region0: #{toy_diffpool_forward.1}
  #allocation0 [shape = 'u32[]', space=smem, size = 0x4, offset = 0x4, fixed_abs, tag = 'smem constant byte address 0x4 - core index']
  #allocation1 [shape = 'u32[144,128]{1,0:T(1,128)}', space=vmem, size = 0x12000, scoped, tag = 'internal scratch']
  #allocation2 [shape = 'f32[1,1]{1,0:T(1,128)S(1)}', space=vmem, size = 0x200, scoped, tag = 'scoped memory for toy_diffpool_forward.1']
  %s0 = inlined_call_operand.vmem [shape: f32[2,16,16], index: 0, kind: input, shape index: {}]
  %s1 = inlined_call_operand.vmem [shape: f32[2,16,128], index: 1, kind: input, shape index: {}]
  %s2 = inlined_call_operand.vmem [shape: f32[128,64], index: 2, kind: input, shape index: {}]
  %s3 = inlined_call_operand.vmem [shape: f32[128,32], index: 3, kind: input, shape index: {}]
  %s4 = inlined_call_operand.vmem [shape: f32[64,64], index: 4, kind: input, shape index: {}]
  %s5 = inlined_call_operand.vmem [shape: f32[64,16], index: 5, kind: input, shape index: {}]
  %s6 = inlined_call_operand.vmem [shape: f32[64,64], index: 6, kind: input, shape index: {}]
  %s7 = inlined_call_operand.vmem [shape: f32[1,64], index: 7, kind: input, shape index: {}]
  %s8 = inlined_call_operand.<no memory space> [shape: f32[1,1], index: 8, kind: input, shape index: {}]
  %s9 = inlined_call_operand.vmem [shape: f32[2,1,128], index: 9, kind: output, shape index: {}]
  %s10 = sld [smem:[#allocation0]]
  $region69: #{toy_diffpool_forward.1} parent=0
    _
  %s12 = ssub.s32 1, %s10
  %s13 = scalar_select 0, %s12, %s10
  %v14 = vstv %s8
  %15 = vst [vmem:[#allocation2] sm:$0x1] %v14
  loop: start=0, step=1, limit=4
  $region2: #{toy_diffpool_forward.1} parent=0 // loop_pre_header
    _
  $region3: #{toy_diffpool_forward.1} parent=0 // loop_header
    %s17 = sphi 0, %s21
    %p18 = scmp.ge.s32.totalorder %s17, 4
    %s27 = sphi 0, %s29
    %s30 = sphi 0, %s27
    %s31 = sphi 0, %s30
    %s47 = sphi 0, %s31
    %s53 = sphi 0, %s55
    %s56 = sphi 0, %s53
    %s57 = sphi 0, %s56
    %s73 = sphi 0, %s57
    %s77 = sphi 0, %s77
    %s79 = sphi 0, %s77
    %s80 = sphi 0, %s79
    %s94 = sphi 0, %s80
    %s98 = sphi 0, %s98
    %s100 = sphi 0, %s98
    %s101 = sphi 0, %s100
    %s115 = sphi 0, %s101
    %s119 = sphi 0, %s119
    %s121 = sphi 0, %s119
    %s122 = sphi 0, %s121
    %s136 = sphi 0, %s122
    %s140 = sphi 0, %s140
    %s142 = sphi 0, %s140
    %s143 = sphi 0, %s142
    %s157 = sphi 0, %s143
    %s161 = sphi 0, %s161
    %s163 = sphi 0, %s161
    %s164 = sphi 0, %s163
    %s178 = sphi 0, %s164
    %s182 = sphi 0, %s182
    %s184 = sphi 0, %s182
    %s185 = sphi 0, %s184
    %s199 = sphi 0, %s185
    %s203 = sphi 0, %s203
    %s205 = sphi 0, %s203
    %s206 = sphi 0, %s205
    %s220 = sphi 0, %s206
    %s226 = sphi 0, %s228
    %s229 = sphi 0, %s226
    %s230 = sphi 0, %s229
    %s246 = sphi 0, %s230
  $region4: #{toy_diffpool_forward.1} parent=0 // loop_header_branch
    %20 = sbr.rel (%p18) target = $region8
  $region5: #{toy_diffpool_forward.1} parent=0 // loop_body
    %s22 = ssub.s32 %s17, 1
    %s23 = ssub.s32 %s17, 2
    %s24 = sadd.s32 %s17, 1
    %s25 = ssub.s32 %s17, %s24
    %p26 = scmp.eq.s32.totalorder %s25, 0
    %s28 = sadd.s32 %s27, 1
    %s29 = scalar_select %p26, %s27, %s28
    %p32 = pneg %p26
    %p33 = scmp.eq.s32.totalorder %s17, 1
    %p34 = por %p32, %p33
    %p35 = scmp.ne.s32.totalorder %s27, %s30
    %p36 = scmp.eq.s32.totalorder %s17, 0
    %p37 = por %p35, %p36
    %p38 = scmp.ne.s32.totalorder %s27, %s30
    %p39 = scmp.eq.s32.totalorder %s22, 1
    %p40 = por %p38, %p39
    %p41 = scmp.ne.s32.totalorder %s30, %s31
    %p42 = scmp.eq.s32.totalorder %s22, 0
    %p43 = por %p41, %p42
    %p44 = scmp.ne.s32.totalorder %s30, %s31
    %p45 = scmp.eq.s32.totalorder %s23, 1
    %p46 = por %p44, %p45
    %p48 = scmp.ne.s32.totalorder %s31, %s47
    %p49 = scmp.eq.s32.totalorder %s23, 0
    %p50 = por %p48, %p49
    %s51 = ssub.s32 %s17, %s24
    %p52 = scmp.eq.s32.totalorder %s51, 0
    %s54 = sadd.s32 %s53, 1
    %s55 = scalar_select %p52, %s53, %s54
    %p58 = pneg %p52
    %p59 = scmp.eq.s32.totalorder %s17, 1
    %p60 = por %p58, %p59
    %p61 = scmp.ne.s32.totalorder %s53, %s56
    %p62 = scmp.eq.s32.totalorder %s17, 0
    %p63 = por %p61, %p62
    %p64 = scmp.ne.s32.totalorder %s53, %s56
    %p65 = scmp.eq.s32.totalorder %s22, 1
    %p66 = por %p64, %p65
    %p67 = scmp.ne.s32.totalorder %s56, %s57
    %p68 = scmp.eq.s32.totalorder %s22, 0
    %p69 = por %p67, %p68
    %p70 = scmp.ne.s32.totalorder %s56, %s57
    %p71 = scmp.eq.s32.totalorder %s23, 1
    %p72 = por %p70, %p71
    %p74 = scmp.ne.s32.totalorder %s57, %s73
    %p75 = scmp.eq.s32.totalorder %s23, 0
    %p76 = por %p74, %p75
    %s78 = sadd.s32 %s77, 1
    %p81 = scmp.eq.s32.totalorder %s17, 1
    %p82 = scmp.ne.s32.totalorder %s77, %s79
    %p83 = scmp.eq.s32.totalorder %s17, 0
    %p84 = por %p82, %p83
    %p85 = scmp.ne.s32.totalorder %s77, %s79
    %p86 = scmp.eq.s32.totalorder %s22, 1
    %p87 = por %p85, %p86
    %p88 = scmp.ne.s32.totalorder %s79, %s80
    %p89 = scmp.eq.s32.totalorder %s22, 0
    %p90 = por %p88, %p89
    %p91 = scmp.ne.s32.totalorder %s79, %s80
    %p92 = scmp.eq.s32.totalorder %s23, 1
    %p93 = por %p91, %p92
    %p95 = scmp.ne.s32.totalorder %s80, %s94
    %p96 = scmp.eq.s32.totalorder %s23, 0
    %p97 = por %p95, %p96
    %s99 = sadd.s32 %s98, 1
    %p102 = scmp.eq.s32.totalorder %s17, 1
    %p103 = scmp.ne.s32.totalorder %s98, %s100
    %p104 = scmp.eq.s32.totalorder %s17, 0
    %p105 = por %p103, %p104
    %p106 = scmp.ne.s32.totalorder %s98, %s100
    %p107 = scmp.eq.s32.totalorder %s22, 1
    %p108 = por %p106, %p107
    %p109 = scmp.ne.s32.totalorder %s100, %s101
    %p110 = scmp.eq.s32.totalorder %s22, 0
    %p111 = por %p109, %p110
    %p112 = scmp.ne.s32.totalorder %s100, %s101
    %p113 = scmp.eq.s32.totalorder %s23, 1
    %p114 = por %p112, %p113
    %p116 = scmp.ne.s32.totalorder %s101, %s115
    %p117 = scmp.eq.s32.totalorder %s23, 0
    %p118 = por %p116, %p117
    %s120 = sadd.s32 %s119, 1
    %p123 = scmp.eq.s32.totalorder %s17, 1
    %p124 = scmp.ne.s32.totalorder %s119, %s121
    %p125 = scmp.eq.s32.totalorder %s17, 0
    %p126 = por %p124, %p125
    %p127 = scmp.ne.s32.totalorder %s119, %s121
    %p128 = scmp.eq.s32.totalorder %s22, 1
    %p129 = por %p127, %p128
    %p130 = scmp.ne.s32.totalorder %s121, %s122
    %p131 = scmp.eq.s32.totalorder %s22, 0
    %p132 = por %p130, %p131
    %p133 = scmp.ne.s32.totalorder %s121, %s122
    %p134 = scmp.eq.s32.totalorder %s23, 1
    %p135 = por %p133, %p134
    %p137 = scmp.ne.s32.totalorder %s122, %s136
    %p138 = scmp.eq.s32.totalorder %s23, 0
    %p139 = por %p137, %p138
    %s141 = sadd.s32 %s140, 1
    %p144 = scmp.eq.s32.totalorder %s17, 1
    %p145 = scmp.ne.s32.totalorder %s140, %s142
    %p146 = scmp.eq.s32.totalorder %s17, 0
    %p147 = por %p145, %p146
    %p148 = scmp.ne.s32.totalorder %s140, %s142
    %p149 = scmp.eq.s32.totalorder %s22, 1
    %p150 = por %p148, %p149
    %p151 = scmp.ne.s32.totalorder %s142, %s143
    %p152 = scmp.eq.s32.totalorder %s22, 0
    %p153 = por %p151, %p152
    %p154 = scmp.ne.s32.totalorder %s142, %s143
    %p155 = scmp.eq.s32.totalorder %s23, 1
    %p156 = por %p154, %p155
    %p158 = scmp.ne.s32.totalorder %s143, %s157
    %p159 = scmp.eq.s32.totalorder %s23, 0
    %p160 = por %p158, %p159
    %s162 = sadd.s32 %s161, 1
    %p165 = scmp.eq.s32.totalorder %s17, 1
    %p166 = scmp.ne.s32.totalorder %s161, %s163
    %p167 = scmp.eq.s32.totalorder %s17, 0
    %p168 = por %p166, %p167
    %p169 = scmp.ne.s32.totalorder %s161, %s163
    %p170 = scmp.eq.s32.totalorder %s22, 1
    %p171 = por %p169, %p170
    %p172 = scmp.ne.s32.totalorder %s163, %s164
    %p173 = scmp.eq.s32.totalorder %s22, 0
    %p174 = por %p172, %p173
    %p175 = scmp.ne.s32.totalorder %s163, %s164
    %p176 = scmp.eq.s32.totalorder %s23, 1
    %p177 = por %p175, %p176
    %p179 = scmp.ne.s32.totalorder %s164, %s178
    %p180 = scmp.eq.s32.totalorder %s23, 0
    %p181 = por %p179, %p180
    %s183 = sadd.s32 %s182, 1
    %p186 = scmp.eq.s32.totalorder %s17, 1
    %p187 = scmp.ne.s32.totalorder %s182, %s184
    %p188 = scmp.eq.s32.totalorder %s17, 0
    %p189 = por %p187, %p188
    %p190 = scmp.ne.s32.totalorder %s182, %s184
    %p191 = scmp.eq.s32.totalorder %s22, 1
    %p192 = por %p190, %p191
    %p193 = scmp.ne.s32.totalorder %s184, %s185
    %p194 = scmp.eq.s32.totalorder %s22, 0
    %p195 = por %p193, %p194
    %p196 = scmp.ne.s32.totalorder %s184, %s185
    %p197 = scmp.eq.s32.totalorder %s23, 1
    %p198 = por %p196, %p197
    %p200 = scmp.ne.s32.totalorder %s185, %s199
    %p201 = scmp.eq.s32.totalorder %s23, 0
    %p202 = por %p200, %p201
    %s204 = sadd.s32 %s203, 1
    %p207 = scmp.eq.s32.totalorder %s17, 1
    %p208 = scmp.ne.s32.totalorder %s203, %s205
    %p209 = scmp.eq.s32.totalorder %s17, 0
    %p210 = por %p208, %p209
    %p211 = scmp.ne.s32.totalorder %s203, %s205
    %p212 = scmp.eq.s32.totalorder %s22, 1
    %p213 = por %p211, %p212
    %p214 = scmp.ne.s32.totalorder %s205, %s206
    %p215 = scmp.eq.s32.totalorder %s22, 0
    %p216 = por %p214, %p215
    %p217 = scmp.ne.s32.totalorder %s205, %s206
    %p218 = scmp.eq.s32.totalorder %s23, 1
    %p219 = por %p217, %p218
    %p221 = scmp.ne.s32.totalorder %s206, %s220
    %p222 = scmp.eq.s32.totalorder %s23, 0
    %p223 = por %p221, %p222
    %s224 = ssub.s32 %s17, %s24
    %p225 = scmp.eq.s32.totalorder %s224, 0
    %s227 = sadd.s32 %s226, 1
    %s228 = scalar_select %p225, %s226, %s227
    %p231 = pneg %p225
    %p232 = scmp.eq.s32.totalorder %s17, 1
    %p233 = por %p231, %p232
    %p234 = scmp.ne.s32.totalorder %s226, %s229
    %p235 = scmp.eq.s32.totalorder %s17, 0
    %p236 = por %p234, %p235
    %p237 = scmp.ne.s32.totalorder %s226, %s229
    %p238 = scmp.eq.s32.totalorder %s22, 1
    %p239 = por %p237, %p238
    %p240 = scmp.ne.s32.totalorder %s229, %s230
    %p241 = scmp.eq.s32.totalorder %s22, 0
    %p242 = por %p240, %p241
    %p243 = scmp.ne.s32.totalorder %s229, %s230
    %p244 = scmp.eq.s32.totalorder %s23, 1
    %p245 = por %p243, %p244
    %p247 = scmp.ne.s32.totalorder %s230, %s246
    %p248 = scmp.eq.s32.totalorder %s23, 0
    %p249 = por %p247, %p248
    %p250 = scmp.le.s32.totalorder 1, %s17
    %p251 = scmp.lt.s32.totalorder %s17, 3
    %p252 = pnand %p250, %p251
    %p253 = pneg %p252
    // Predicated region
    $region9: #{toy_diffpool_forward.1} parent=5 // pred_check
      _
    $region10: #{toy_diffpool_forward.1} parent=5 // pred_check_branch
      %255 = sbr.rel (%p252) target = $region12
    $region11: #{toy_diffpool_forward.1} parent=5 // pred_region
      %s256 = ssub.s32 %s17, 1
      // Predicated region
      $region13: #{toy_diffpool_forward.1} parent=11 // pred_check
        %p257 = pneg %p90
      $region14: #{toy_diffpool_forward.1} parent=11 // pred_check_branch
        %259 = sbr.rel (%p257) target = $region16
      $region15: #{toy_diffpool_forward.1} parent=11 // pred_region
        _
      $region16: #{toy_diffpool_forward.1} parent=11 // pred_fallthru
        _
      // Predicated region
      $region17: #{toy_diffpool_forward.1} parent=11 // pred_check
        %p260 = pneg %p111
      $region18: #{toy_diffpool_forward.1} parent=11 // pred_check_branch
        %262 = sbr.rel (%p260) target = $region20
      $region19: #{toy_diffpool_forward.1} parent=11 // pred_region
        _
      $region20: #{toy_diffpool_forward.1} parent=11 // pred_fallthru
        _
      // Predicated region
      $region21: #{toy_diffpool_forward.1} parent=11 // pred_check
        %p263 = pneg %p132
      $region22: #{toy_diffpool_forward.1} parent=11 // pred_check_branch
        %265 = sbr.rel (%p263) target = $region24
      $region23: #{toy_diffpool_forward.1} parent=11 // pred_region
        _
      $region24: #{toy_diffpool_forward.1} parent=11 // pred_fallthru
        _
      // Predicated region
      $region25: #{toy_diffpool_forward.1} parent=11 // pred_check
        %p266 = pneg %p153
      $region26: #{toy_diffpool_forward.1} parent=11 // pred_check_branch
        %268 = sbr.rel (%p266) target = $region28
      $region27: #{toy_diffpool_forward.1} parent=11 // pred_region
        _
      $region28: #{toy_diffpool_forward.1} parent=11 // pred_fallthru
        _
      // Predicated region
      $region29: #{toy_diffpool_forward.1} parent=11 // pred_check
        %p269 = pneg %p174
      $region30: #{toy_diffpool_forward.1} parent=11 // pred_check_branch
        %271 = sbr.rel (%p269) target = $region32
      $region31: #{toy_diffpool_forward.1} parent=11 // pred_region
        _
      $region32: #{toy_diffpool_forward.1} parent=11 // pred_fallthru
        _
      // Predicated region
      $region33: #{toy_diffpool_forward.1} parent=11 // pred_check
        %p272 = pneg %p195
      $region34: #{toy_diffpool_forward.1} parent=11 // pred_check_branch
        %274 = sbr.rel (%p272) target = $region36
      $region35: #{toy_diffpool_forward.1} parent=11 // pred_region
        _
      $region36: #{toy_diffpool_forward.1} parent=11 // pred_fallthru
        _
      // Predicated region
      $region37: #{toy_diffpool_forward.1} parent=11 // pred_check
        %p275 = pneg %p216
      $region38: #{toy_diffpool_forward.1} parent=11 // pred_check_branch
        %277 = sbr.rel (%p275) target = $region40
      $region39: #{toy_diffpool_forward.1} parent=11 // pred_region
        _
      $region40: #{toy_diffpool_forward.1} parent=11 // pred_fallthru
        _
    $region12: #{toy_diffpool_forward.1} parent=5 // pred_fallthru
      _
    %p278 = scmp.lt.s32.totalorder %s17, 2
    // Predicated region
    $region41: #{toy_diffpool_forward.1} parent=5 // pred_check
      %p279 = pneg %p278
    $region42: #{toy_diffpool_forward.1} parent=5 // pred_check_branch
      %281 = sbr.rel (%p279) target = $region44
    $region43: #{toy_diffpool_forward.1} parent=5 // pred_region
      // Predicated region
      $region45: #{toy_diffpool_forward.1} parent=43 // pred_check
        %p282 = pneg %p37
      $region46: #{toy_diffpool_forward.1} parent=43 // pred_check_branch
        %284 = sbr.rel (%p282) target = $region48
      $region47: #{toy_diffpool_forward.1} parent=43 // pred_region
        %p285 = scmp.lt.s32.totalorder %s17, 1
        %s286 = scalar_select %p285, %s17, 1
        %s287 = smul.addr %s286, 2
        %s288 = smul.addr %s287, 8
        %s289 = scalar_lea.vmem %s0, %s288
      $region48: #{toy_diffpool_forward.1} parent=43 // pred_fallthru
        _
      // Predicated region
      $region49: #{toy_diffpool_forward.1} parent=43 // pred_check
        %p290 = pneg %p63
      $region50: #{toy_diffpool_forward.1} parent=43 // pred_check_branch
        %292 = sbr.rel (%p290) target = $region52
      $region51: #{toy_diffpool_forward.1} parent=43 // pred_region
        %p293 = scmp.lt.s32.totalorder %s17, 1
        %s294 = scalar_select %p293, %s17, 1
        %s295 = smul.addr %s294, 2
        %s296 = smul.addr %s295, 8
        %s297 = scalar_lea.vmem %s1, %s296
      $region52: #{toy_diffpool_forward.1} parent=43 // pred_fallthru
        _
    $region44: #{toy_diffpool_forward.1} parent=5 // pred_fallthru
      _
    %p298 = scmp.le.s32.totalorder 1, %s17
    %p299 = scmp.lt.s32.totalorder %s17, 3
    %p300 = pnand %p298, %p299
    %p301 = pneg %p300
    // Predicated region
    $region53: #{toy_diffpool_forward.1} parent=5 // pred_check
      _
    $region54: #{toy_diffpool_forward.1} parent=5 // pred_check_branch
      %303 = sbr.rel (%p300) target = $region56
    $region55: #{toy_diffpool_forward.1} parent=5 // pred_region
      %s304 = ssub.s32 %s17, 1
      %p305 = scmp.lt.s32.totalorder %s22, 1
      %s306 = scalar_select %p305, %s22, 1
      %s307 = smul.addr %s306, 2
      %s308 = smul.addr %s307, 8
      %s309 = scalar_lea.vmem %s0, %s308
      %p310 = pneg %p43
      %p311 = pneg %p40
      %p312 = scmp.lt.s32.totalorder %s22, 1
      %s313 = scalar_select %p312, %s22, 1
      %s314 = smul.addr %s313, 2
      %s315 = smul.addr %s314, 8
      %s316 = scalar_lea.vmem %s1, %s315
      %p317 = pneg %p69
      %p318 = pneg %p66
      %p319 = pneg %p90
      %p320 = pneg %p87
      %p321 = pneg %p111
      %p322 = pneg %p108
      %p323 = pneg %p132
      %p324 = pneg %p129
      %p325 = pneg %p153
      %p326 = pneg %p150
      %p327 = pneg %p174
      %p328 = pneg %p171
      %p329 = pneg %p195
      %p330 = pneg %p192
      %p331 = pneg %p216
      %p332 = pneg %p213
      %p333 = pneg %p242
      %p334 = pneg %p239
      %p335 = scmp.lt.s32.totalorder %s22, 1
      %s336 = scalar_select %p335, %s22, 1
      %s337 = scalar_lea.vmem %s9, %s336
      %p338 = scmp.lt.s32.totalorder %s22, 1
      %s339 = scalar_select %p338, %s22, 1
      %s340 = smul.addr %s339, 2
      %s341 = smul.addr %s340, 8
      %s342 = scalar_lea.vmem %s0, %s341
      %p343 = scmp.lt.s32.totalorder %s22, 1
      %s344 = scalar_select %p343, %s22, 1
      %s345 = smul.addr %s344, 2
      %s346 = smul.addr %s345, 8
      %s347 = scalar_lea.vmem %s1, %s346
      %p348 = scmp.lt.s32.totalorder %s22, 1
      %s349 = scalar_select %p348, %s22, 1
      %s350 = scalar_lea.vmem %s9, %s349
      %v351 = vld [vmem:[%s342] sm:$0xff]
      %v352 = vld [vmem:[%s342 + $0x8] sm:$0xff]
      %v353 = vld [vmem:[%s347] sm:$0xff]
      %v354 = vld [vmem:[%s347 + $0x8] sm:$0xff]
      %vm355 = vcmask 130048
      %v357 = vsel %vm355, %v351, 0
      %v360 = vsel %vm355, %v352, 0
      %362 = vmatprep.subr.mxu0 0.0
      %363 = vmatpush1.msra.mxu0 %v353
      %364 = vmatprep.subr.mxu0 0.0
      %365 = vmatpush1.msra.mxu0 %v354
      %366 = vmatprep.subr.mxu0 0.0
      %367 = vmatpush1.msra.mxu0 0.0
      %368 = vmatprep.subr.mxu0 0.0
      %369 = vmatpush1.msra.mxu0 0.0
      %370 = vmatprep.subr.mxu0 0.0
      %371 = vmatpush1.msra.mxu0 0.0
      %372 = vmatprep.subr.mxu0 0.0
      %373 = vmatpush1.msra.mxu0 0.0
      %374 = vmatprep.subr.mxu0 0.0
      %375 = vmatpush1.msra.mxu0 0.0
      %376 = vmatprep.subr.mxu0 0.0
      %377 = vmatpush1.msra.mxu0 0.0
      %378 = vmatprep.subr.mxu0 0.0
      %379 = vmatpush1.msra.mxu0 0.0
      %380 = vmatprep.subr.mxu0 0.0
      %381 = vmatpush1.msra.mxu0 0.0
      %382 = vmatprep.subr.mxu0 0.0
      %383 = vmatpush1.msra.mxu0 0.0
      %384 = vmatprep.subr.mxu0 0.0
      %385 = vmatpush1.msra.mxu0 0.0
      %386 = vmatprep.subr.mxu0 0.0
      %387 = vmatpush1.msra.mxu0 0.0
      %388 = vmatprep.subr.mxu0 0.0
      %389 = vmatpush1.msra.mxu0 0.0
      %390 = vmatprep.subr.mxu0 0.0
      %391 = vmatpush1.msra.mxu0 0.0
      %392 = vmatprep.subr.mxu0 0.0
      %393 = vmatpush1.msra.mxu0 0.0
      %394 = vmatprep.subr.mxu0 0.0
      %395 = vmatpush1.msra.mxu0 0.0
      %396 = vmatprep.subr.mxu0 0.0
      %397 = vmatpush1.msra.mxu0 0.0
      %398 = vmatprep.subr.mxu0 0.0
      %399 = vmatpush1.msra.mxu0 0.0
      %400 = vmatprep.subr.mxu0 0.0
      %401 = vmatpush1.msra.mxu0 0.0
      %402 = vmatprep.subr.mxu0 0.0
      %403 = vmatpush1.msra.mxu0 0.0
      %404 = vmatprep.subr.mxu0 0.0
      %405 = vmatpush1.msra.mxu0 0.0
      %406 = vmatprep.subr.mxu0 0.0
      %407 = vmatpush1.msra.mxu0 0.0
      %408 = vmatprep.subr.mxu0 0.0
      %409 = vmatpush1.msra.mxu0 0.0
      %410 = vmatprep.subr.mxu0 0.0
      %411 = vmatpush1.msra.mxu0 0.0
      %412 = vmatprep.subr.mxu0 0.0
      %413 = vmatpush1.msra.mxu0 0.0
      %414 = vmatprep.subr.mxu0 0.0
      %415 = vmatpush1.msra.mxu0 0.0
      %416 = vmatprep.subr.mxu0 0.0
      %417 = vmatpush1.msra.mxu0 0.0
      %418 = vmatprep.subr.mxu0 0.0
      %419 = vmatpush1.msra.mxu0 0.0
      %420 = vmatprep.subr.mxu0 0.0
      %421 = vmatpush1.msra.mxu0 0.0
      %422 = vmatprep.subr.mxu0 0.0
      %423 = vmatpush1.msra.mxu0 0.0
      %424 = vmatprep.subr.mxu0 0.0
      %425 = vmatpush1.msra.mxu0 0.0
      %426 = vmatprep.mubr.f32.mxu0 0.0
      %427 = vmatmul.mubr.f32.gmra.mrb[0].mxu0 %v357
      %v428 = vpop.f32.mrb[0].mxu0
      %v429 = vadd.f32 0.0, %v428
      %v430 = vpop.f32.mrb[0].mxu0
      %431 = vmatprep.mubr.f32.mxu0 0.0
      %432 = vmatmul.mubr.f32.gmra.mrb[0].mxu0 %v360
      %v433 = vpop.f32.mrb[0].mxu0
      %v434 = vadd.f32 0.0, %v433
      %v435 = vpop.f32.mrb[0].mxu0
      %436 = vdwg.mxu0
      %v437 = vld [vmem:[%s2] sm:$0xff]
      %v438 = vld [vmem:[%s2 + $0x8] sm:$0xff]
      %v439 = vld [vmem:[%s2 + $0x10] sm:$0xff]
      %v440 = vld [vmem:[%s2 + $0x18] sm:$0xff]
      %v441 = vld [vmem:[%s2 + $0x20] sm:$0xff]
      %v442 = vld [vmem:[%s2 + $0x28] sm:$0xff]
      %v443 = vld [vmem:[%s2 + $0x30] sm:$0xff]
      %v444 = vld [vmem:[%s2 + $0x38] sm:$0xff]
      %v445 = vld [vmem:[%s2 + $0x40] sm:$0xff]
      %v446 = vld [vmem:[%s2 + $0x48] sm:$0xff]
      %v447 = vld [vmem:[%s2 + $0x50] sm:$0xff]
      %v448 = vld [vmem:[%s2 + $0x58] sm:$0xff]
      %v449 = vld [vmem:[%s2 + $0x60] sm:$0xff]
      %v450 = vld [vmem:[%s2 + $0x68] sm:$0xff]
      %v451 = vld [vmem:[%s2 + $0x70] sm:$0xff]
      %v452 = vld [vmem:[%s2 + $0x78] sm:$0xff]
      %453 = vmatprep.subr.mxu0 0.0
      %454 = vmatpush1.msra.mxu0 %v437
      %455 = vmatprep.subr.mxu0 0.0
      %456 = vmatpush1.msra.mxu0 %v438
      %457 = vmatprep.subr.mxu0 0.0
      %458 = vmatpush1.msra.mxu0 %v439
      %459 = vmatprep.subr.mxu0 0.0
      %460 = vmatpush1.msra.mxu0 %v440
      %461 = vmatprep.subr.mxu0 0.0
      %462 = vmatpush1.msra.mxu0 %v441
      %463 = vmatprep.subr.mxu0 0.0
      %464 = vmatpush1.msra.mxu0 %v442
      %465 = vmatprep.subr.mxu0 0.0
      %466 = vmatpush1.msra.mxu0 %v443
      %467 = vmatprep.subr.mxu0 0.0
      %468 = vmatpush1.msra.mxu0 %v444
      %469 = vmatprep.subr.mxu0 0.0
      %470 = vmatpush1.msra.mxu0 %v445
      %471 = vmatprep.subr.mxu0 0.0
      %472 = vmatpush1.msra.mxu0 %v446
      %473 = vmatprep.subr.mxu0 0.0
      %474 = vmatpush1.msra.mxu0 %v447
      %475 = vmatprep.subr.mxu0 0.0
      %476 = vmatpush1.msra.mxu0 %v448
      %477 = vmatprep.subr.mxu0 0.0
      %478 = vmatpush1.msra.mxu0 %v449
      %479 = vmatprep.subr.mxu0 0.0
      %480 = vmatpush1.msra.mxu0 %v450
      %481 = vmatprep.subr.mxu0 0.0
      %482 = vmatpush1.msra.mxu0 %v451
      %483 = vmatprep.subr.mxu0 0.0
      %484 = vmatpush1.msra.mxu0 %v452
      %485 = vmatprep.subr.mxu0 0.0
      %486 = vmatpush1.msra.mxu0 0.0
      %487 = vmatprep.subr.mxu0 0.0
      %488 = vmatpush1.msra.mxu0 0.0
      %489 = vmatprep.subr.mxu0 0.0
      %490 = vmatpush1.msra.mxu0 0.0
      %491 = vmatprep.subr.mxu0 0.0
      %492 = vmatpush1.msra.mxu0 0.0
      %493 = vmatprep.subr.mxu0 0.0
      %494 = vmatpush1.msra.mxu0 0.0
      %495 = vmatprep.subr.mxu0 0.0
      %496 = vmatpush1.msra.mxu0 0.0
      %497 = vmatprep.subr.mxu0 0.0
      %498 = vmatpush1.msra.mxu0 0.0
      %499 = vmatprep.subr.mxu0 0.0
      %500 = vmatpush1.msra.mxu0 0.0
      %501 = vmatprep.subr.mxu0 0.0
      %502 = vmatpush1.msra.mxu0 0.0
      %503 = vmatprep.subr.mxu0 0.0
      %504 = vmatpush1.msra.mxu0 0.0
      %505 = vmatprep.subr.mxu0 0.0
      %506 = vmatpush1.msra.mxu0 0.0
      %507 = vmatprep.subr.mxu0 0.0
      %508 = vmatpush1.msra.mxu0 0.0
      %509 = vmatprep.subr.mxu0 0.0
      %510 = vmatpush1.msra.mxu0 0.0
      %511 = vmatprep.subr.mxu0 0.0
      %512 = vmatpush1.msra.mxu0 0.0
      %513 = vmatprep.subr.mxu0 0.0
      %514 = vmatpush1.msra.mxu0 0.0
      %515 = vmatprep.subr.mxu0 0.0
      %516 = vmatpush1.msra.mxu0 0.0
      %517 = vmatprep.mubr.f32.mxu0 0.0
      %518 = vmatmul.mubr.f32.gmra.mrb[0].mxu0 %v429
      %v519 = vpop.f32.mrb[0].mxu0
      %v520 = vadd.f32 0.0, %v519
      %v521 = vpop.f32.mrb[0].mxu0
      %522 = vmatprep.mubr.f32.mxu0 0.0
      %523 = vmatmul.mubr.f32.gmra.mrb[0].mxu0 %v434
      %v524 = vpop.f32.mrb[0].mxu0
      %v525 = vadd.f32 0.0, %v524
      %v526 = vpop.f32.mrb[0].mxu0
      %527 = vdwg.mxu0
      %v528 = vld [vmem:[%s3] sm:$0xff]
      %v529 = vld [vmem:[%s3 + $0x8] sm:$0xff]
      %v530 = vld [vmem:[%s3 + $0x10] sm:$0xff]
      %v531 = vld [vmem:[%s3 + $0x18] sm:$0xff]
      %v532 = vld [vmem:[%s3 + $0x20] sm:$0xff]
      %v533 = vld [vmem:[%s3 + $0x28] sm:$0xff]
      %v534 = vld [vmem:[%s3 + $0x30] sm:$0xff]
      %v535 = vld [vmem:[%s3 + $0x38] sm:$0xff]
      %v536 = vld [vmem:[%s3 + $0x40] sm:$0xff]
      %v537 = vld [vmem:[%s3 + $0x48] sm:$0xff]
      %v538 = vld [vmem:[%s3 + $0x50] sm:$0xff]
      %v539 = vld [vmem:[%s3 + $0x58] sm:$0xff]
      %v540 = vld [vmem:[%s3 + $0x60] sm:$0xff]
      %v541 = vld [vmem:[%s3 + $0x68] sm:$0xff]
      %v542 = vld [vmem:[%s3 + $0x70] sm:$0xff]
      %v543 = vld [vmem:[%s3 + $0x78] sm:$0xff]
      %544 = vmatprep.subr.mxu0 0.0
      %545 = vmatpush1.msra.mxu0 %v528
      %546 = vmatprep.subr.mxu0 0.0
      %547 = vmatpush1.msra.mxu0 %v529
      %548 = vmatprep.subr.mxu0 0.0
      %549 = vmatpush1.msra.mxu0 %v530
      %550 = vmatprep.subr.mxu0 0.0
      %551 = vmatpush1.msra.mxu0 %v531
      %552 = vmatprep.subr.mxu0 0.0
      %553 = vmatpush1.msra.mxu0 %v532
      %554 = vmatprep.subr.mxu0 0.0
      %555 = vmatpush1.msra.mxu0 %v533
      %556 = vmatprep.subr.mxu0 0.0
      %557 = vmatpush1.msra.mxu0 %v534
      %558 = vmatprep.subr.mxu0 0.0
      %559 = vmatpush1.msra.mxu0 %v535
      %560 = vmatprep.subr.mxu0 0.0
      %561 = vmatpush1.msra.mxu0 %v536
      %562 = vmatprep.subr.mxu0 0.0
      %563 = vmatpush1.msra.mxu0 %v537
      %564 = vmatprep.subr.mxu0 0.0
      %565 = vmatpush1.msra.mxu0 %v538
      %566 = vmatprep.subr.mxu0 0.0
      %567 = vmatpush1.msra.mxu0 %v539
      %568 = vmatprep.subr.mxu0 0.0
      %569 = vmatpush1.msra.mxu0 %v540
      %570 = vmatprep.subr.mxu0 0.0
      %571 = vmatpush1.msra.mxu0 %v541
      %572 = vmatprep.subr.mxu0 0.0
      %573 = vmatpush1.msra.mxu0 %v542
      %574 = vmatprep.subr.mxu0 0.0
      %575 = vmatpush1.msra.mxu0 %v543
      %576 = vmatprep.subr.mxu0 0.0
      %577 = vmatpush1.msra.mxu0 0.0
      %578 = vmatprep.subr.mxu0 0.0
      %579 = vmatpush1.msra.mxu0 0.0
      %580 = vmatprep.subr.mxu0 0.0
      %581 = vmatpush1.msra.mxu0 0.0
      %582 = vmatprep.subr.mxu0 0.0
      %583 = vmatpush1.msra.mxu0 0.0
      %584 = vmatprep.subr.mxu0 0.0
      %585 = vmatpush1.msra.mxu0 0.0
      %586 = vmatprep.subr.mxu0 0.0
      %587 = vmatpush1.msra.mxu0 0.0
      %588 = vmatprep.subr.mxu0 0.0
      %589 = vmatpush1.msra.mxu0 0.0
      %590 = vmatprep.subr.mxu0 0.0
      %591 = vmatpush1.msra.mxu0 0.0
      %592 = vmatprep.subr.mxu0 0.0
      %593 = vmatpush1.msra.mxu0 0.0
      %594 = vmatprep.subr.mxu0 0.0
      %595 = vmatpush1.msra.mxu0 0.0
      %596 = vmatprep.subr.mxu0 0.0
      %597 = vmatpush1.msra.mxu0 0.0
      %598 = vmatprep.subr.mxu0 0.0
      %599 = vmatpush1.msra.mxu0 0.0
      %600 = vmatprep.subr.mxu0 0.0
      %601 = vmatpush1.msra.mxu0 0.0
      %602 = vmatprep.subr.mxu0 0.0
      %603 = vmatpush1.msra.mxu0 0.0
      %604 = vmatprep.subr.mxu0 0.0
      %605 = vmatpush1.msra.mxu0 0.0
      %606 = vmatprep.subr.mxu0 0.0
      %607 = vmatpush1.msra.mxu0 0.0
      %608 = vmatprep.mubr.f32.mxu0 0.0
      %609 = vmatmul.mubr.f32.gmra.mrb[0].mxu0 %v429
      %v610 = vpop.f32.mrb[0].mxu0
      %v611 = vadd.f32 0.0, %v610
      %v612 = vpop.f32.mrb[0].mxu0
      %613 = vmatprep.mubr.f32.mxu0 0.0
      %614 = vmatmul.mubr.f32.gmra.mrb[0].mxu0 %v434
      %v615 = vpop.f32.mrb[0].mxu0
      %v616 = vadd.f32 0.0, %v615
      %v617 = vpop.f32.mrb[0].mxu0
      %618 = vdwg.mxu0
      %vm619 = vcmask 261120
      %v620 = vsel %vm619, %v611, -inf
      %621 = vmax.xlane.f32.xlu0 %v620
      %v622 = vpop.xlane.xlu0 %621
      %v623 = vsel %vm619, %v616, -inf
      %624 = vmax.xlane.f32.xlu0 %v623
      %v625 = vpop.xlane.xlu0 %624
      %v626 = vsub.f32 %v611, %v622
      %v627 = vsub.f32 %v616, %v625
      %v628 = vmul.f32 %v626, 1.442695
      %v629 = vpow.pop %v628
      %v630 = vmul.f32 %v627, 1.442695
      %v631 = vpow.pop %v630
      %v632 = vsel %vm619, %v629, 0.0
      %633 = vadd.xlane.f32.xlu0 %v632
      %v634 = vpop.xlane.xlu0 %633
      %v635 = vsel %vm619, %v631, 0.0
      %636 = vadd.xlane.f32.xlu0 %v635
      %v637 = vpop.xlane.xlu0 %636
      %v638 = vrcp.pop %v634
      %v639 = vrcp.pop %v637
      %v640 = vmul.f32 %v629, %v638
      %v641 = vmul.f32 %v631, %v639
      %642 = vxpose.xlu0.b32.start [1/16] %v640, 128
      %643 = vxpose.xlu0.b32.cont [2/16] %v641, 128
      %644 = vxpose.xlu0.b32.cont [3/16] 0.0, 128
      %645 = vxpose.xlu0.b32.cont [4/16] 0.0, 128
      %646 = vxpose.xlu0.b32.cont [5/16] 0.0, 128
      %647 = vxpose.xlu0.b32.cont [6/16] 0.0, 128
      %648 = vxpose.xlu0.b32.cont [7/16] 0.0, 128
      %649 = vxpose.xlu0.b32.cont [8/16] 0.0, 128
      %650 = vxpose.xlu0.b32.cont [9/16] 0.0, 128
      %651 = vxpose.xlu0.b32.cont [10/16] 0.0, 128
      %652 = vxpose.xlu0.b32.cont [11/16] 0.0, 128
      %653 = vxpose.xlu0.b32.cont [12/16] 0.0, 128
      %654 = vxpose.xlu0.b32.cont [13/16] 0.0, 128
      %655 = vxpose.xlu0.b32.cont [14/16] 0.0, 128
      %656 = vxpose.xlu0.b32.cont [15/16] 0.0, 128
      %657 = vxpose.xlu0.b32.end [16/16] 0.0, 128
      %v658 = vpop.trf.xlu0
      %v659 = vpop.trf.xlu0
      %v660 = vpop.trf.xlu0
      %v661 = vpop.trf.xlu0
      %v662 = vpop.trf.xlu0
      %v663 = vpop.trf.xlu0
      %v664 = vpop.trf.xlu0
      %v665 = vpop.trf.xlu0
      %v666 = vpop.trf.xlu0
      %v667 = vpop.trf.xlu0
      %v668 = vpop.trf.xlu0
      %v669 = vpop.trf.xlu0
      %v670 = vpop.trf.xlu0
      %v671 = vpop.trf.xlu0
      %v672 = vpop.trf.xlu0
      %v673 = vpop.trf.xlu0
      %v675 = vsel %vm355, %v658, 0
      %v678 = vsel %vm355, %v659, 0
      %v681 = vsel %vm355, %v660, 0
      %v684 = vsel %vm355, %v661, 0
      %686 = vmatprep.subr.mxu0 0.0
      %687 = vmatpush1.msra.mxu0 %v520
      %688 = vmatprep.subr.mxu0 0.0
      %689 = vmatpush1.msra.mxu0 %v525
      %690 = vmatprep.subr.mxu0 0.0
      %691 = vmatpush1.msra.mxu0 0.0
      %692 = vmatprep.subr.mxu0 0.0
      %693 = vmatpush1.msra.mxu0 0.0
      %694 = vmatprep.subr.mxu0 0.0
      %695 = vmatpush1.msra.mxu0 0.0
      %696 = vmatprep.subr.mxu0 0.0
      %697 = vmatpush1.msra.mxu0 0.0
      %698 = vmatprep.subr.mxu0 0.0
      %699 = vmatpush1.msra.mxu0 0.0
      %700 = vmatprep.subr.mxu0 0.0
      %701 = vmatpush1.msra.mxu0 0.0
      %702 = vmatprep.subr.mxu0 0.0
      %703 = vmatpush1.msra.mxu0 0.0
      %704 = vmatprep.subr.mxu0 0.0
      %705 = vmatpush1.msra.mxu0 0.0
      %706 = vmatprep.subr.mxu0 0.0
      %707 = vmatpush1.msra.mxu0 0.0
      %708 = vmatprep.subr.mxu0 0.0
      %709 = vmatpush1.msra.mxu0 0.0
      %710 = vmatprep.subr.mxu0 0.0
      %711 = vmatpush1.msra.mxu0 0.0
      %712 = vmatprep.subr.mxu0 0.0
      %713 = vmatpush1.msra.mxu0 0.0
      %714 = vmatprep.subr.mxu0 0.0
      %715 = vmatpush1.msra.mxu0 0.0
      %716 = vmatprep.subr.mxu0 0.0
      %717 = vmatpush1.msra.mxu0 0.0
      %718 = vmatprep.subr.mxu0 0.0
      %719 = vmatpush1.msra.mxu0 0.0
      %720 = vmatprep.subr.mxu0 0.0
      %721 = vmatpush1.msra.mxu0 0.0
      %722 = vmatprep.subr.mxu0 0.0
      %723 = vmatpush1.msra.mxu0 0.0
      %724 = vmatprep.subr.mxu0 0.0
      %725 = vmatpush1.msra.mxu0 0.0
      %726 = vmatprep.subr.mxu0 0.0
      %727 = vmatpush1.msra.mxu0 0.0
      %728 = vmatprep.subr.mxu0 0.0
      %729 = vmatpush1.msra.mxu0 0.0
      %730 = vmatprep.subr.mxu0 0.0
      %731 = vmatpush1.msra.mxu0 0.0
      %732 = vmatprep.subr.mxu0 0.0
      %733 = vmatpush1.msra.mxu0 0.0
      %734 = vmatprep.subr.mxu0 0.0
      %735 = vmatpush1.msra.mxu0 0.0
      %736 = vmatprep.subr.mxu0 0.0
      %737 = vmatpush1.msra.mxu0 0.0
      %738 = vmatprep.subr.mxu0 0.0
      %739 = vmatpush1.msra.mxu0 0.0
      %740 = vmatprep.subr.mxu0 0.0
      %741 = vmatpush1.msra.mxu0 0.0
      %742 = vmatprep.subr.mxu0 0.0
      %743 = vmatpush1.msra.mxu0 0.0
      %744 = vmatprep.subr.mxu0 0.0
      %745 = vmatpush1.msra.mxu0 0.0
      %746 = vmatprep.subr.mxu0 0.0
      %747 = vmatpush1.msra.mxu0 0.0
      %748 = vmatprep.subr.mxu0 0.0
      %749 = vmatpush1.msra.mxu0 0.0
      %750 = vmatprep.mubr.f32.mxu0 0.0
      %751 = vmatmul.mubr.f32.gmra.mrb[0].mxu0 %v675
      %v752 = vpop.f32.mrb[0].mxu0
      %v753 = vadd.f32 0.0, %v752
      %v754 = vpop.f32.mrb[0].mxu0
      %755 = vmatprep.mubr.f32.mxu0 0.0
      %756 = vmatmul.mubr.f32.gmra.mrb[0].mxu0 %v678
      %v757 = vpop.f32.mrb[0].mxu0
      %v758 = vadd.f32 0.0, %v757
      %v759 = vpop.f32.mrb[0].mxu0
      %760 = vmatprep.mubr.f32.mxu0 0.0
      %761 = vmatmul.mubr.f32.gmra.mrb[0].mxu0 %v681
      %v762 = vpop.f32.mrb[0].mxu0
      %v763 = vadd.f32 0.0, %v762
      %v764 = vpop.f32.mrb[0].mxu0
      %765 = vmatprep.mubr.f32.mxu0 0.0
      %766 = vmatmul.mubr.f32.gmra.mrb[0].mxu0 %v684
      %v767 = vpop.f32.mrb[0].mxu0
      %v768 = vadd.f32 0.0, %v767
      %v769 = vpop.f32.mrb[0].mxu0
      %770 = vdwg.mxu0
      %771 = vmatprep.subr.mxu0 0.0
      %772 = vmatpush1.msra.mxu0 %v640
      %773 = vmatprep.subr.mxu0 0.0
      %774 = vmatpush1.msra.mxu0 %v641
      %775 = vmatprep.subr.mxu0 0.0
      %776 = vmatpush1.msra.mxu0 0.0
      %777 = vmatprep.subr.mxu0 0.0
      %778 = vmatpush1.msra.mxu0 0.0
      %779 = vmatprep.subr.mxu0 0.0
      %780 = vmatpush1.msra.mxu0 0.0
      %781 = vmatprep.subr.mxu0 0.0
      %782 = vmatpush1.msra.mxu0 0.0
      %783 = vmatprep.subr.mxu0 0.0
      %784 = vmatpush1.msra.mxu0 0.0
      %785 = vmatprep.subr.mxu0 0.0
      %786 = vmatpush1.msra.mxu0 0.0
      %787 = vmatprep.subr.mxu0 0.0
      %788 = vmatpush1.msra.mxu0 0.0
      %789 = vmatprep.subr.mxu0 0.0
      %790 = vmatpush1.msra.mxu0 0.0
      %791 = vmatprep.subr.mxu0 0.0
      %792 = vmatpush1.msra.mxu0 0.0
      %793 = vmatprep.subr.mxu0 0.0
      %794 = vmatpush1.msra.mxu0 0.0
      %795 = vmatprep.subr.mxu0 0.0
      %796 = vmatpush1.msra.mxu0 0.0
      %797 = vmatprep.subr.mxu0 0.0
      %798 = vmatpush1.msra.mxu0 0.0
      %799 = vmatprep.subr.mxu0 0.0
      %800 = vmatpush1.msra.mxu0 0.0
      %801 = vmatprep.subr.mxu0 0.0
      %802 = vmatpush1.msra.mxu0 0.0
      %803 = vmatprep.subr.mxu0 0.0
      %804 = vmatpush1.msra.mxu0 0.0
      %805 = vmatprep.subr.mxu0 0.0
      %806 = vmatpush1.msra.mxu0 0.0
      %807 = vmatprep.subr.mxu0 0.0
      %808 = vmatpush1.msra.mxu0 0.0
      %809 = vmatprep.subr.mxu0 0.0
      %810 = vmatpush1.msra.mxu0 0.0
      %811 = vmatprep.subr.mxu0 0.0
      %812 = vmatpush1.msra.mxu0 0.0
      %813 = vmatprep.subr.mxu0 0.0
      %814 = vmatpush1.msra.mxu0 0.0
      %815 = vmatprep.subr.mxu0 0.0
      %816 = vmatpush1.msra.mxu0 0.0
      %817 = vmatprep.subr.mxu0 0.0
      %818 = vmatpush1.msra.mxu0 0.0
      %819 = vmatprep.subr.mxu0 0.0
      %820 = vmatpush1.msra.mxu0 0.0
      %821 = vmatprep.subr.mxu0 0.0
      %822 = vmatpush1.msra.mxu0 0.0
      %823 = vmatprep.subr.mxu0 0.0
      %824 = vmatpush1.msra.mxu0 0.0
      %825 = vmatprep.subr.mxu0 0.0
      %826 = vmatpush1.msra.mxu0 0.0
      %827 = vmatprep.subr.mxu0 0.0
      %828 = vmatpush1.msra.mxu0 0.0
      %829 = vmatprep.subr.mxu0 0.0
      %830 = vmatpush1.msra.mxu0 0.0
      %831 = vmatprep.subr.mxu0 0.0
      %832 = vmatpush1.msra.mxu0 0.0
      %833 = vmatprep.subr.mxu0 0.0
      %834 = vmatpush1.msra.mxu0 0.0
      %835 = vmatprep.mubr.f32.mxu0 0.0
      %836 = vmatmul.mubr.f32.gmra.mrb[0].mxu0 %v357
      %v837 = vpop.f32.mrb[0].mxu0
      %v838 = vadd.f32 0.0, %v837
      %v839 = vpop.f32.mrb[0].mxu0
      %840 = vmatprep.mubr.f32.mxu0 0.0
      %841 = vmatmul.mubr.f32.gmra.mrb[0].mxu0 %v360
      %v842 = vpop.f32.mrb[0].mxu0
      %v843 = vadd.f32 0.0, %v842
      %v844 = vpop.f32.mrb[0].mxu0
      %845 = vdwg.mxu0
      %846 = vmatprep.subr.mxu0 0.0
      %847 = vmatpush1.msra.mxu0 %v838
      %848 = vmatprep.subr.mxu0 0.0
      %849 = vmatpush1.msra.mxu0 %v843
      %850 = vmatprep.subr.mxu0 0.0
      %851 = vmatpush1.msra.mxu0 0.0
      %852 = vmatprep.subr.mxu0 0.0
      %853 = vmatpush1.msra.mxu0 0.0
      %854 = vmatprep.subr.mxu0 0.0
      %855 = vmatpush1.msra.mxu0 0.0
      %856 = vmatprep.subr.mxu0 0.0
      %857 = vmatpush1.msra.mxu0 0.0
      %858 = vmatprep.subr.mxu0 0.0
      %859 = vmatpush1.msra.mxu0 0.0
      %860 = vmatprep.subr.mxu0 0.0
      %861 = vmatpush1.msra.mxu0 0.0
      %862 = vmatprep.subr.mxu0 0.0
      %863 = vmatpush1.msra.mxu0 0.0
      %864 = vmatprep.subr.mxu0 0.0
      %865 = vmatpush1.msra.mxu0 0.0
      %866 = vmatprep.subr.mxu0 0.0
      %867 = vmatpush1.msra.mxu0 0.0
      %868 = vmatprep.subr.mxu0 0.0
      %869 = vmatpush1.msra.mxu0 0.0
      %870 = vmatprep.subr.mxu0 0.0
      %871 = vmatpush1.msra.mxu0 0.0
      %872 = vmatprep.subr.mxu0 0.0
      %873 = vmatpush1.msra.mxu0 0.0
      %874 = vmatprep.subr.mxu0 0.0
      %875 = vmatpush1.msra.mxu0 0.0
      %876 = vmatprep.subr.mxu0 0.0
      %877 = vmatpush1.msra.mxu0 0.0
      %878 = vmatprep.subr.mxu0 0.0
      %879 = vmatpush1.msra.mxu0 0.0
      %880 = vmatprep.subr.mxu0 0.0
      %881 = vmatpush1.msra.mxu0 0.0
      %882 = vmatprep.subr.mxu0 0.0
      %883 = vmatpush1.msra.mxu0 0.0
      %884 = vmatprep.subr.mxu0 0.0
      %885 = vmatpush1.msra.mxu0 0.0
      %886 = vmatprep.subr.mxu0 0.0
      %887 = vmatpush1.msra.mxu0 0.0
      %888 = vmatprep.subr.mxu0 0.0
      %889 = vmatpush1.msra.mxu0 0.0
      %890 = vmatprep.subr.mxu0 0.0
      %891 = vmatpush1.msra.mxu0 0.0
      %892 = vmatprep.subr.mxu0 0.0
      %893 = vmatpush1.msra.mxu0 0.0
      %894 = vmatprep.subr.mxu0 0.0
      %895 = vmatpush1.msra.mxu0 0.0
      %896 = vmatprep.subr.mxu0 0.0
      %897 = vmatpush1.msra.mxu0 0.0
      %898 = vmatprep.subr.mxu0 0.0
      %899 = vmatpush1.msra.mxu0 0.0
      %900 = vmatprep.subr.mxu0 0.0
      %901 = vmatpush1.msra.mxu0 0.0
      %902 = vmatprep.subr.mxu0 0.0
      %903 = vmatpush1.msra.mxu0 0.0
      %904 = vmatprep.subr.mxu0 0.0
      %905 = vmatpush1.msra.mxu0 0.0
      %906 = vmatprep.subr.mxu0 0.0
      %907 = vmatpush1.msra.mxu0 0.0
      %908 = vmatprep.subr.mxu0 0.0
      %909 = vmatpush1.msra.mxu0 0.0
      %910 = vmatprep.mubr.f32.mxu0 0.0
      %911 = vmatmul.mubr.f32.gmra.mrb[0].mxu0 %v675
      %v912 = vpop.f32.mrb[0].mxu0
      %v913 = vadd.f32 0.0, %v912
      %v914 = vpop.f32.mrb[0].mxu0
      %915 = vmatprep.mubr.f32.mxu0 0.0
      %916 = vmatmul.mubr.f32.gmra.mrb[0].mxu0 %v678
      %v917 = vpop.f32.mrb[0].mxu0
      %v918 = vadd.f32 0.0, %v917
      %v919 = vpop.f32.mrb[0].mxu0
      %920 = vmatprep.mubr.f32.mxu0 0.0
      %921 = vmatmul.mubr.f32.gmra.mrb[0].mxu0 %v681
      %v922 = vpop.f32.mrb[0].mxu0
      %v923 = vadd.f32 0.0, %v922
      %v924 = vpop.f32.mrb[0].mxu0
      %925 = vmatprep.mubr.f32.mxu0 0.0
      %926 = vmatmul.mubr.f32.gmra.mrb[0].mxu0 %v684
      %v927 = vpop.f32.mrb[0].mxu0
      %v928 = vadd.f32 0.0, %v927
      %v929 = vpop.f32.mrb[0].mxu0
      %930 = vdwg.mxu0
      %v932 = vsel %vm619, %v913, 0
      %v935 = vsel %vm619, %v918, 0
      %v938 = vsel %vm619, %v923, 0
      %v941 = vsel %vm619, %v928, 0
      %943 = vmatprep.subr.mxu0 0.0
      %944 = vmatpush1.msra.mxu0 %v753
      %945 = vmatprep.subr.mxu0 0.0
      %946 = vmatpush1.msra.mxu0 %v758
      %947 = vmatprep.subr.mxu0 0.0
      %948 = vmatpush1.msra.mxu0 %v763
      %949 = vmatprep.subr.mxu0 0.0
      %950 = vmatpush1.msra.mxu0 %v768
      %951 = vmatprep.subr.mxu0 0.0
      %952 = vmatpush1.msra.mxu0 0.0
      %953 = vmatprep.subr.mxu0 0.0
      %954 = vmatpush1.msra.mxu0 0.0
      %955 = vmatprep.subr.mxu0 0.0
      %956 = vmatpush1.msra.mxu0 0.0
      %957 = vmatprep.subr.mxu0 0.0
      %958 = vmatpush1.msra.mxu0 0.0
      %959 = vmatprep.subr.mxu0 0.0
      %960 = vmatpush1.msra.mxu0 0.0
      %961 = vmatprep.subr.mxu0 0.0
      %962 = vmatpush1.msra.mxu0 0.0
      %963 = vmatprep.subr.mxu0 0.0
      %964 = vmatpush1.msra.mxu0 0.0
      %965 = vmatprep.subr.mxu0 0.0
      %966 = vmatpush1.msra.mxu0 0.0
      %967 = vmatprep.subr.mxu0 0.0
      %968 = vmatpush1.msra.mxu0 0.0
      %969 = vmatprep.subr.mxu0 0.0
      %970 = vmatpush1.msra.mxu0 0.0
      %971 = vmatprep.subr.mxu0 0.0
      %972 = vmatpush1.msra.mxu0 0.0
      %973 = vmatprep.subr.mxu0 0.0
      %974 = vmatpush1.msra.mxu0 0.0
      %975 = vmatprep.subr.mxu0 0.0
      %976 = vmatpush1.msra.mxu0 0.0
      %977 = vmatprep.subr.mxu0 0.0
      %978 = vmatpush1.msra.mxu0 0.0
      %979 = vmatprep.subr.mxu0 0.0
      %980 = vmatpush1.msra.mxu0 0.0
      %981 = vmatprep.subr.mxu0 0.0
      %982 = vmatpush1.msra.mxu0 0.0
      %983 = vmatprep.subr.mxu0 0.0
      %984 = vmatpush1.msra.mxu0 0.0
      %985 = vmatprep.subr.mxu0 0.0
      %986 = vmatpush1.msra.mxu0 0.0
      %987 = vmatprep.subr.mxu0 0.0
      %988 = vmatpush1.msra.mxu0 0.0
      %989 = vmatprep.subr.mxu0 0.0
      %990 = vmatpush1.msra.mxu0 0.0
      %991 = vmatprep.subr.mxu0 0.0
      %992 = vmatpush1.msra.mxu0 0.0
      %993 = vmatprep.subr.mxu0 0.0
      %994 = vmatpush1.msra.mxu0 0.0
      %995 = vmatprep.subr.mxu0 0.0
      %996 = vmatpush1.msra.mxu0 0.0
      %997 = vmatprep.subr.mxu0 0.0
      %998 = vmatpush1.msra.mxu0 0.0
      %999 = vmatprep.subr.mxu0 0.0
      %1000 = vmatpush1.msra.mxu0 0.0
      %1001 = vmatprep.subr.mxu0 0.0
      %1002 = vmatpush1.msra.mxu0 0.0
      %1003 = vmatprep.subr.mxu0 0.0
      %1004 = vmatpush1.msra.mxu0 0.0
      %1005 = vmatprep.subr.mxu0 0.0
      %1006 = vmatpush1.msra.mxu0 0.0
      %1007 = vmatprep.mubr.f32.mxu0 0.0
      %1008 = vmatmul.mubr.f32.gmra.mrb[0].mxu0 %v932
      %v1009 = vpop.f32.mrb[0].mxu0
      %v1010 = vadd.f32 0.0, %v1009
      %v1011 = vpop.f32.mrb[0].mxu0
      %1012 = vmatprep.mubr.f32.mxu0 0.0
      %1013 = vmatmul.mubr.f32.gmra.mrb[0].mxu0 %v935
      %v1014 = vpop.f32.mrb[0].mxu0
      %v1015 = vadd.f32 0.0, %v1014
      %v1016 = vpop.f32.mrb[0].mxu0
      %1017 = vmatprep.mubr.f32.mxu0 0.0
      %1018 = vmatmul.mubr.f32.gmra.mrb[0].mxu0 %v938
      %v1019 = vpop.f32.mrb[0].mxu0
      %v1020 = vadd.f32 0.0, %v1019
      %v1021 = vpop.f32.mrb[0].mxu0
      %1022 = vmatprep.mubr.f32.mxu0 0.0
      %1023 = vmatmul.mubr.f32.gmra.mrb[0].mxu0 %v941
      %v1024 = vpop.f32.mrb[0].mxu0
      %v1025 = vadd.f32 0.0, %v1024
      %v1026 = vpop.f32.mrb[0].mxu0
      %1027 = vdwg.mxu0
      %v1028 = vld [vmem:[%s4] sm:$0xff]
      %v1029 = vld [vmem:[%s4 + $0x8] sm:$0xff]
      %v1030 = vld [vmem:[%s4 + $0x10] sm:$0xff]
      %v1031 = vld [vmem:[%s4 + $0x18] sm:$0xff]
      %v1032 = vld [vmem:[%s4 + $0x20] sm:$0xff]
      %v1033 = vld [vmem:[%s4 + $0x28] sm:$0xff]
      %v1034 = vld [vmem:[%s4 + $0x30] sm:$0xff]
      %v1035 = vld [vmem:[%s4 + $0x38] sm:$0xff]
      %vm1036 = vcmask 523264
      %v1038 = vsel %vm1036, %v1010, 0
      %v1041 = vsel %vm1036, %v1015, 0
      %v1044 = vsel %vm1036, %v1020, 0
      %v1047 = vsel %vm1036, %v1025, 0
      %1049 = vmatprep.subr.mxu0 0.0
      %1050 = vmatpush1.msra.mxu0 %v1028
      %1051 = vmatprep.subr.mxu0 0.0
      %1052 = vmatpush1.msra.mxu0 %v1029
      %1053 = vmatprep.subr.mxu0 0.0
      %1054 = vmatpush1.msra.mxu0 %v1030
      %1055 = vmatprep.subr.mxu0 0.0
      %1056 = vmatpush1.msra.mxu0 %v1031
      %1057 = vmatprep.subr.mxu0 0.0
      %1058 = vmatpush1.msra.mxu0 %v1032
      %1059 = vmatprep.subr.mxu0 0.0
      %1060 = vmatpush1.msra.mxu0 %v1033
      %1061 = vmatprep.subr.mxu0 0.0
      %1062 = vmatpush1.msra.mxu0 %v1034
      %1063 = vmatprep.subr.mxu0 0.0
      %1064 = vmatpush1.msra.mxu0 %v1035
      %1065 = vmatprep.subr.mxu0 0.0
      %1066 = vmatpush1.msra.mxu0 0.0
      %1067 = vmatprep.subr.mxu0 0.0
      %1068 = vmatpush1.msra.mxu0 0.0
      %1069 = vmatprep.subr.mxu0 0.0
      %1070 = vmatpush1.msra.mxu0 0.0
      %1071 = vmatprep.subr.mxu0 0.0
      %1072 = vmatpush1.msra.mxu0 0.0
      %1073 = vmatprep.subr.mxu0 0.0
      %1074 = vmatpush1.msra.mxu0 0.0
      %1075 = vmatprep.subr.mxu0 0.0
      %1076 = vmatpush1.msra.mxu0 0.0
      %1077 = vmatprep.subr.mxu0 0.0
      %1078 = vmatpush1.msra.mxu0 0.0
      %1079 = vmatprep.subr.mxu0 0.0
      %1080 = vmatpush1.msra.mxu0 0.0
      %1081 = vmatprep.subr.mxu0 0.0
      %1082 = vmatpush1.msra.mxu0 0.0
      %1083 = vmatprep.subr.mxu0 0.0
      %1084 = vmatpush1.msra.mxu0 0.0
      %1085 = vmatprep.subr.mxu0 0.0
      %1086 = vmatpush1.msra.mxu0 0.0
      %1087 = vmatprep.subr.mxu0 0.0
      %1088 = vmatpush1.msra.mxu0 0.0
      %1089 = vmatprep.subr.mxu0 0.0
      %1090 = vmatpush1.msra.mxu0 0.0
      %1091 = vmatprep.subr.mxu0 0.0
      %1092 = vmatpush1.msra.mxu0 0.0
      %1093 = vmatprep.subr.mxu0 0.0
      %1094 = vmatpush1.msra.mxu0 0.0
      %1095 = vmatprep.subr.mxu0 0.0
      %1096 = vmatpush1.msra.mxu0 0.0
      %1097 = vmatprep.subr.mxu0 0.0
      %1098 = vmatpush1.msra.mxu0 0.0
      %1099 = vmatprep.subr.mxu0 0.0
      %1100 = vmatpush1.msra.mxu0 0.0
      %1101 = vmatprep.subr.mxu0 0.0
      %1102 = vmatpush1.msra.mxu0 0.0
      %1103 = vmatprep.subr.mxu0 0.0
      %1104 = vmatpush1.msra.mxu0 0.0
      %1105 = vmatprep.subr.mxu0 0.0
      %1106 = vmatpush1.msra.mxu0 0.0
      %1107 = vmatprep.subr.mxu0 0.0
      %1108 = vmatpush1.msra.mxu0 0.0
      %1109 = vmatprep.subr.mxu0 0.0
      %1110 = vmatpush1.msra.mxu0 0.0
      %1111 = vmatprep.subr.mxu0 0.0
      %1112 = vmatpush1.msra.mxu0 0.0
      %1113 = vmatprep.mubr.f32.mxu0 0.0
      %1114 = vmatmul.mubr.f32.gmra.mrb[0].mxu0 %v1038
      %v1115 = vpop.f32.mrb[0].mxu0
      %v1116 = vadd.f32 0.0, %v1115
      %v1117 = vpop.f32.mrb[0].mxu0
      %1118 = vmatprep.mubr.f32.mxu0 0.0
      %1119 = vmatmul.mubr.f32.gmra.mrb[0].mxu0 %v1041
      %v1120 = vpop.f32.mrb[0].mxu0
      %v1121 = vadd.f32 0.0, %v1120
      %v1122 = vpop.f32.mrb[0].mxu0
      %1123 = vmatprep.mubr.f32.mxu0 0.0
      %1124 = vmatmul.mubr.f32.gmra.mrb[0].mxu0 %v1044
      %v1125 = vpop.f32.mrb[0].mxu0
      %v1126 = vadd.f32 0.0, %v1125
      %v1127 = vpop.f32.mrb[0].mxu0
      %1128 = vmatprep.mubr.f32.mxu0 0.0
      %1129 = vmatmul.mubr.f32.gmra.mrb[0].mxu0 %v1047
      %v1130 = vpop.f32.mrb[0].mxu0
      %v1131 = vadd.f32 0.0, %v1130
      %v1132 = vpop.f32.mrb[0].mxu0
      %1133 = vdwg.mxu0
      %v1134 = vld [vmem:[%s5] sm:$0xff]
      %v1135 = vld [vmem:[%s5 + $0x8] sm:$0xff]
      %v1136 = vld [vmem:[%s5 + $0x10] sm:$0xff]
      %v1137 = vld [vmem:[%s5 + $0x18] sm:$0xff]
      %v1138 = vld [vmem:[%s5 + $0x20] sm:$0xff]
      %v1139 = vld [vmem:[%s5 + $0x28] sm:$0xff]
      %v1140 = vld [vmem:[%s5 + $0x30] sm:$0xff]
      %v1141 = vld [vmem:[%s5 + $0x38] sm:$0xff]
      %1142 = vmatprep.subr.mxu0 0.0
      %1143 = vmatpush1.msra.mxu0 %v1134
      %1144 = vmatprep.subr.mxu0 0.0
      %1145 = vmatpush1.msra.mxu0 %v1135
      %1146 = vmatprep.subr.mxu0 0.0
      %1147 = vmatpush1.msra.mxu0 %v1136
      %1148 = vmatprep.subr.mxu0 0.0
      %1149 = vmatpush1.msra.mxu0 %v1137
      %1150 = vmatprep.subr.mxu0 0.0
      %1151 = vmatpush1.msra.mxu0 %v1138
      %1152 = vmatprep.subr.mxu0 0.0
      %1153 = vmatpush1.msra.mxu0 %v1139
      %1154 = vmatprep.subr.mxu0 0.0
      %1155 = vmatpush1.msra.mxu0 %v1140
      %1156 = vmatprep.subr.mxu0 0.0
      %1157 = vmatpush1.msra.mxu0 %v1141
      %1158 = vmatprep.subr.mxu0 0.0
      %1159 = vmatpush1.msra.mxu0 0.0
      %1160 = vmatprep.subr.mxu0 0.0
      %1161 = vmatpush1.msra.mxu0 0.0
      %1162 = vmatprep.subr.mxu0 0.0
      %1163 = vmatpush1.msra.mxu0 0.0
      %1164 = vmatprep.subr.mxu0 0.0
      %1165 = vmatpush1.msra.mxu0 0.0
      %1166 = vmatprep.subr.mxu0 0.0
      %1167 = vmatpush1.msra.mxu0 0.0
      %1168 = vmatprep.subr.mxu0 0.0
      %1169 = vmatpush1.msra.mxu0 0.0
      %1170 = vmatprep.subr.mxu0 0.0
      %1171 = vmatpush1.msra.mxu0 0.0
      %1172 = vmatprep.subr.mxu0 0.0
      %1173 = vmatpush1.msra.mxu0 0.0
      %1174 = vmatprep.subr.mxu0 0.0
      %1175 = vmatpush1.msra.mxu0 0.0
      %1176 = vmatprep.subr.mxu0 0.0
      %1177 = vmatpush1.msra.mxu0 0.0
      %1178 = vmatprep.subr.mxu0 0.0
      %1179 = vmatpush1.msra.mxu0 0.0
      %1180 = vmatprep.subr.mxu0 0.0
      %1181 = vmatpush1.msra.mxu0 0.0
      %1182 = vmatprep.subr.mxu0 0.0
      %1183 = vmatpush1.msra.mxu0 0.0
      %1184 = vmatprep.subr.mxu0 0.0
      %1185 = vmatpush1.msra.mxu0 0.0
      %1186 = vmatprep.subr.mxu0 0.0
      %1187 = vmatpush1.msra.mxu0 0.0
      %1188 = vmatprep.subr.mxu0 0.0
      %1189 = vmatpush1.msra.mxu0 0.0
      %1190 = vmatprep.subr.mxu0 0.0
      %1191 = vmatpush1.msra.mxu0 0.0
      %1192 = vmatprep.subr.mxu0 0.0
      %1193 = vmatpush1.msra.mxu0 0.0
      %1194 = vmatprep.subr.mxu0 0.0
      %1195 = vmatpush1.msra.mxu0 0.0
      %1196 = vmatprep.subr.mxu0 0.0
      %1197 = vmatpush1.msra.mxu0 0.0
      %1198 = vmatprep.subr.mxu0 0.0
      %1199 = vmatpush1.msra.mxu0 0.0
      %1200 = vmatprep.subr.mxu0 0.0
      %1201 = vmatpush1.msra.mxu0 0.0
      %1202 = vmatprep.subr.mxu0 0.0
      %1203 = vmatpush1.msra.mxu0 0.0
      %1204 = vmatprep.subr.mxu0 0.0
      %1205 = vmatpush1.msra.mxu0 0.0
      %1206 = vmatprep.mubr.f32.mxu0 0.0
      %1207 = vmatmul.mubr.f32.gmra.mrb[0].mxu0 %v1038
      %v1208 = vpop.f32.mrb[0].mxu0
      %v1209 = vadd.f32 0.0, %v1208
      %v1210 = vpop.f32.mrb[0].mxu0
      %1211 = vmatprep.mubr.f32.mxu0 0.0
      %1212 = vmatmul.mubr.f32.gmra.mrb[0].mxu0 %v1041
      %v1213 = vpop.f32.mrb[0].mxu0
      %v1214 = vadd.f32 0.0, %v1213
      %v1215 = vpop.f32.mrb[0].mxu0
      %1216 = vmatprep.mubr.f32.mxu0 0.0
      %1217 = vmatmul.mubr.f32.gmra.mrb[0].mxu0 %v1044
      %v1218 = vpop.f32.mrb[0].mxu0
      %v1219 = vadd.f32 0.0, %v1218
      %v1220 = vpop.f32.mrb[0].mxu0
      %1221 = vmatprep.mubr.f32.mxu0 0.0
      %1222 = vmatmul.mubr.f32.gmra.mrb[0].mxu0 %v1047
      %v1223 = vpop.f32.mrb[0].mxu0
      %v1224 = vadd.f32 0.0, %v1223
      %v1225 = vpop.f32.mrb[0].mxu0
      %1226 = vdwg.mxu0
      %v1227 = vsel %vm355, %v1209, -inf
      %1228 = vmax.xlane.f32.xlu0 %v1227
      %v1229 = vpop.xlane.xlu0 %1228
      %v1230 = vsel %vm355, %v1214, -inf
      %1231 = vmax.xlane.f32.xlu0 %v1230
      %v1232 = vpop.xlane.xlu0 %1231
      %v1233 = vsel %vm355, %v1219, -inf
      %1234 = vmax.xlane.f32.xlu0 %v1233
      %v1235 = vpop.xlane.xlu0 %1234
      %v1236 = vsel %vm355, %v1224, -inf
      %1237 = vmax.xlane.f32.xlu0 %v1236
      %v1238 = vpop.xlane.xlu0 %1237
      %v1239 = vsub.f32 %v1209, %v1229
      %v1240 = vsub.f32 %v1214, %v1232
      %v1241 = vsub.f32 %v1219, %v1235
      %v1242 = vsub.f32 %v1224, %v1238
      %v1243 = vmul.f32 %v1239, 1.442695
      %v1244 = vpow.pop %v1243
      %v1245 = vmul.f32 %v1240, 1.442695
      %v1246 = vpow.pop %v1245
      %v1247 = vmul.f32 %v1241, 1.442695
      %v1248 = vpow.pop %v1247
      %v1249 = vmul.f32 %v1242, 1.442695
      %v1250 = vpow.pop %v1249
      %v1251 = vsel %vm355, %v1244, 0.0
      %1252 = vadd.xlane.f32.xlu0 %v1251
      %v1253 = vpop.xlane.xlu0 %1252
      %v1254 = vsel %vm355, %v1246, 0.0
      %1255 = vadd.xlane.f32.xlu0 %v1254
      %v1256 = vpop.xlane.xlu0 %1255
      %v1257 = vsel %vm355, %v1248, 0.0
      %1258 = vadd.xlane.f32.xlu0 %v1257
      %v1259 = vpop.xlane.xlu0 %1258
      %v1260 = vsel %vm355, %v1250, 0.0
      %1261 = vadd.xlane.f32.xlu0 %v1260
      %v1262 = vpop.xlane.xlu0 %1261
      %v1263 = vrcp.pop %v1253
      %v1264 = vrcp.pop %v1256
      %v1265 = vrcp.pop %v1259
      %v1266 = vrcp.pop %v1262
      %v1267 = vmul.f32 %v1244, %v1263
      %v1268 = vmul.f32 %v1246, %v1264
      %v1269 = vmul.f32 %v1248, %v1265
      %v1270 = vmul.f32 %v1250, %v1266
      %1271 = vxpose.xlu0.b32.start [1/16] %v1267, 128
      %1272 = vxpose.xlu0.b32.cont [2/16] %v1268, 128
      %1273 = vxpose.xlu0.b32.cont [3/16] %v1269, 128
      %1274 = vxpose.xlu0.b32.cont [4/16] %v1270, 128
      %1275 = vxpose.xlu0.b32.cont [5/16] 0.0, 128
      %1276 = vxpose.xlu0.b32.cont [6/16] 0.0, 128
      %1277 = vxpose.xlu0.b32.cont [7/16] 0.0, 128
      %1278 = vxpose.xlu0.b32.cont [8/16] 0.0, 128
      %1279 = vxpose.xlu0.b32.cont [9/16] 0.0, 128
      %1280 = vxpose.xlu0.b32.cont [10/16] 0.0, 128
      %1281 = vxpose.xlu0.b32.cont [11/16] 0.0, 128
      %1282 = vxpose.xlu0.b32.cont [12/16] 0.0, 128
      %1283 = vxpose.xlu0.b32.cont [13/16] 0.0, 128
      %1284 = vxpose.xlu0.b32.cont [14/16] 0.0, 128
      %1285 = vxpose.xlu0.b32.cont [15/16] 0.0, 128
      %1286 = vxpose.xlu0.b32.end [16/16] 0.0, 128
      %v1287 = vpop.trf.xlu0
      %v1288 = vpop.trf.xlu0
      %v1289 = vpop.trf.xlu0
      %v1290 = vpop.trf.xlu0
      %v1291 = vpop.trf.xlu0
      %v1292 = vpop.trf.xlu0
      %v1293 = vpop.trf.xlu0
      %v1294 = vpop.trf.xlu0
      %v1295 = vpop.trf.xlu0
      %v1296 = vpop.trf.xlu0
      %v1297 = vpop.trf.xlu0
      %v1298 = vpop.trf.xlu0
      %v1299 = vpop.trf.xlu0
      %v1300 = vpop.trf.xlu0
      %v1301 = vpop.trf.xlu0
      %v1302 = vpop.trf.xlu0
      %v1304 = vsel %vm619, %v1287, 0
      %v1307 = vsel %vm619, %v1288, 0
      %1309 = vmatprep.subr.mxu0 0.0
      %1310 = vmatpush1.msra.mxu0 %v1116
      %1311 = vmatprep.subr.mxu0 0.0
      %1312 = vmatpush1.msra.mxu0 %v1121
      %1313 = vmatprep.subr.mxu0 0.0
      %1314 = vmatpush1.msra.mxu0 %v1126
      %1315 = vmatprep.subr.mxu0 0.0
      %1316 = vmatpush1.msra.mxu0 %v1131
      %1317 = vmatprep.subr.mxu0 0.0
      %1318 = vmatpush1.msra.mxu0 0.0
      %1319 = vmatprep.subr.mxu0 0.0
      %1320 = vmatpush1.msra.mxu0 0.0
      %1321 = vmatprep.subr.mxu0 0.0
      %1322 = vmatpush1.msra.mxu0 0.0
      %1323 = vmatprep.subr.mxu0 0.0
      %1324 = vmatpush1.msra.mxu0 0.0
      %1325 = vmatprep.subr.mxu0 0.0
      %1326 = vmatpush1.msra.mxu0 0.0
      %1327 = vmatprep.subr.mxu0 0.0
      %1328 = vmatpush1.msra.mxu0 0.0
      %1329 = vmatprep.subr.mxu0 0.0
      %1330 = vmatpush1.msra.mxu0 0.0
      %1331 = vmatprep.subr.mxu0 0.0
      %1332 = vmatpush1.msra.mxu0 0.0
      %1333 = vmatprep.subr.mxu0 0.0
      %1334 = vmatpush1.msra.mxu0 0.0
      %1335 = vmatprep.subr.mxu0 0.0
      %1336 = vmatpush1.msra.mxu0 0.0
      %1337 = vmatprep.subr.mxu0 0.0
      %1338 = vmatpush1.msra.mxu0 0.0
      %1339 = vmatprep.subr.mxu0 0.0
      %1340 = vmatpush1.msra.mxu0 0.0
      %1341 = vmatprep.subr.mxu0 0.0
      %1342 = vmatpush1.msra.mxu0 0.0
      %1343 = vmatprep.subr.mxu0 0.0
      %1344 = vmatpush1.msra.mxu0 0.0
      %1345 = vmatprep.subr.mxu0 0.0
      %1346 = vmatpush1.msra.mxu0 0.0
      %1347 = vmatprep.subr.mxu0 0.0
      %1348 = vmatpush1.msra.mxu0 0.0
      %1349 = vmatprep.subr.mxu0 0.0
      %1350 = vmatpush1.msra.mxu0 0.0
      %1351 = vmatprep.subr.mxu0 0.0
      %1352 = vmatpush1.msra.mxu0 0.0
      %1353 = vmatprep.subr.mxu0 0.0
      %1354 = vmatpush1.msra.mxu0 0.0
      %1355 = vmatprep.subr.mxu0 0.0
      %1356 = vmatpush1.msra.mxu0 0.0
      %1357 = vmatprep.subr.mxu0 0.0
      %1358 = vmatpush1.msra.mxu0 0.0
      %1359 = vmatprep.subr.mxu0 0.0
      %1360 = vmatpush1.msra.mxu0 0.0
      %1361 = vmatprep.subr.mxu0 0.0
      %1362 = vmatpush1.msra.mxu0 0.0
      %1363 = vmatprep.subr.mxu0 0.0
      %1364 = vmatpush1.msra.mxu0 0.0
      %1365 = vmatprep.subr.mxu0 0.0
      %1366 = vmatpush1.msra.mxu0 0.0
      %1367 = vmatprep.subr.mxu0 0.0
      %1368 = vmatpush1.msra.mxu0 0.0
      %1369 = vmatprep.subr.mxu0 0.0
      %1370 = vmatpush1.msra.mxu0 0.0
      %1371 = vmatprep.subr.mxu0 0.0
      %1372 = vmatpush1.msra.mxu0 0.0
      %1373 = vmatprep.mubr.f32.mxu0 0.0
      %1374 = vmatmul.mubr.f32.gmra.mrb[0].mxu0 %v1304
      %v1375 = vpop.f32.mrb[0].mxu0
      %v1376 = vadd.f32 0.0, %v1375
      %v1377 = vpop.f32.mrb[0].mxu0
      %1378 = vmatprep.mubr.f32.mxu0 0.0
      %1379 = vmatmul.mubr.f32.gmra.mrb[0].mxu0 %v1307
      %v1380 = vpop.f32.mrb[0].mxu0
      %v1381 = vadd.f32 0.0, %v1380
      %v1382 = vpop.f32.mrb[0].mxu0
      %1383 = vdwg.mxu0
      %1384 = vmatprep.subr.mxu0 0.0
      %1385 = vmatpush1.msra.mxu0 %v1267
      %1386 = vmatprep.subr.mxu0 0.0
      %1387 = vmatpush1.msra.mxu0 %v1268
      %1388 = vmatprep.subr.mxu0 0.0
      %1389 = vmatpush1.msra.mxu0 %v1269
      %1390 = vmatprep.subr.mxu0 0.0
      %1391 = vmatpush1.msra.mxu0 %v1270
      %1392 = vmatprep.subr.mxu0 0.0
      %1393 = vmatpush1.msra.mxu0 0.0
      %1394 = vmatprep.subr.mxu0 0.0
      %1395 = vmatpush1.msra.mxu0 0.0
      %1396 = vmatprep.subr.mxu0 0.0
      %1397 = vmatpush1.msra.mxu0 0.0
      %1398 = vmatprep.subr.mxu0 0.0
      %1399 = vmatpush1.msra.mxu0 0.0
      %1400 = vmatprep.subr.mxu0 0.0
      %1401 = vmatpush1.msra.mxu0 0.0
      %1402 = vmatprep.subr.mxu0 0.0
      %1403 = vmatpush1.msra.mxu0 0.0
      %1404 = vmatprep.subr.mxu0 0.0
      %1405 = vmatpush1.msra.mxu0 0.0
      %1406 = vmatprep.subr.mxu0 0.0
      %1407 = vmatpush1.msra.mxu0 0.0
      %1408 = vmatprep.subr.mxu0 0.0
      %1409 = vmatpush1.msra.mxu0 0.0
      %1410 = vmatprep.subr.mxu0 0.0
      %1411 = vmatpush1.msra.mxu0 0.0
      %1412 = vmatprep.subr.mxu0 0.0
      %1413 = vmatpush1.msra.mxu0 0.0
      %1414 = vmatprep.subr.mxu0 0.0
      %1415 = vmatpush1.msra.mxu0 0.0
      %1416 = vmatprep.subr.mxu0 0.0
      %1417 = vmatpush1.msra.mxu0 0.0
      %1418 = vmatprep.subr.mxu0 0.0
      %1419 = vmatpush1.msra.mxu0 0.0
      %1420 = vmatprep.subr.mxu0 0.0
      %1421 = vmatpush1.msra.mxu0 0.0
      %1422 = vmatprep.subr.mxu0 0.0
      %1423 = vmatpush1.msra.mxu0 0.0
      %1424 = vmatprep.subr.mxu0 0.0
      %1425 = vmatpush1.msra.mxu0 0.0
      %1426 = vmatprep.subr.mxu0 0.0
      %1427 = vmatpush1.msra.mxu0 0.0
      %1428 = vmatprep.subr.mxu0 0.0
      %1429 = vmatpush1.msra.mxu0 0.0
      %1430 = vmatprep.subr.mxu0 0.0
      %1431 = vmatpush1.msra.mxu0 0.0
      %1432 = vmatprep.subr.mxu0 0.0
      %1433 = vmatpush1.msra.mxu0 0.0
      %1434 = vmatprep.subr.mxu0 0.0
      %1435 = vmatpush1.msra.mxu0 0.0
      %1436 = vmatprep.subr.mxu0 0.0
      %1437 = vmatpush1.msra.mxu0 0.0
      %1438 = vmatprep.subr.mxu0 0.0
      %1439 = vmatpush1.msra.mxu0 0.0
      %1440 = vmatprep.subr.mxu0 0.0
      %1441 = vmatpush1.msra.mxu0 0.0
      %1442 = vmatprep.subr.mxu0 0.0
      %1443 = vmatpush1.msra.mxu0 0.0
      %1444 = vmatprep.subr.mxu0 0.0
      %1445 = vmatpush1.msra.mxu0 0.0
      %1446 = vmatprep.subr.mxu0 0.0
      %1447 = vmatpush1.msra.mxu0 0.0
      %1448 = vmatprep.mubr.f32.mxu0 0.0
      %1449 = vmatmul.mubr.f32.gmra.mrb[0].mxu0 %v932
      %v1450 = vpop.f32.mrb[0].mxu0
      %v1451 = vadd.f32 0.0, %v1450
      %v1452 = vpop.f32.mrb[0].mxu0
      %1453 = vmatprep.mubr.f32.mxu0 0.0
      %1454 = vmatmul.mubr.f32.gmra.mrb[0].mxu0 %v935
      %v1455 = vpop.f32.mrb[0].mxu0
      %v1456 = vadd.f32 0.0, %v1455
      %v1457 = vpop.f32.mrb[0].mxu0
      %1458 = vmatprep.mubr.f32.mxu0 0.0
      %1459 = vmatmul.mubr.f32.gmra.mrb[0].mxu0 %v938
      %v1460 = vpop.f32.mrb[0].mxu0
      %v1461 = vadd.f32 0.0, %v1460
      %v1462 = vpop.f32.mrb[0].mxu0
      %1463 = vmatprep.mubr.f32.mxu0 0.0
      %1464 = vmatmul.mubr.f32.gmra.mrb[0].mxu0 %v941
      %v1465 = vpop.f32.mrb[0].mxu0
      %v1466 = vadd.f32 0.0, %v1465
      %v1467 = vpop.f32.mrb[0].mxu0
      %1468 = vdwg.mxu0
      %1469 = vmatprep.subr.mxu0 0.0
      %1470 = vmatpush1.msra.mxu0 %v1451
      %1471 = vmatprep.subr.mxu0 0.0
      %1472 = vmatpush1.msra.mxu0 %v1456
      %1473 = vmatprep.subr.mxu0 0.0
      %1474 = vmatpush1.msra.mxu0 %v1461
      %1475 = vmatprep.subr.mxu0 0.0
      %1476 = vmatpush1.msra.mxu0 %v1466
      %1477 = vmatprep.subr.mxu0 0.0
      %1478 = vmatpush1.msra.mxu0 0.0
      %1479 = vmatprep.subr.mxu0 0.0
      %1480 = vmatpush1.msra.mxu0 0.0
      %1481 = vmatprep.subr.mxu0 0.0
      %1482 = vmatpush1.msra.mxu0 0.0
      %1483 = vmatprep.subr.mxu0 0.0
      %1484 = vmatpush1.msra.mxu0 0.0
      %1485 = vmatprep.subr.mxu0 0.0
      %1486 = vmatpush1.msra.mxu0 0.0
      %1487 = vmatprep.subr.mxu0 0.0
      %1488 = vmatpush1.msra.mxu0 0.0
      %1489 = vmatprep.subr.mxu0 0.0
      %1490 = vmatpush1.msra.mxu0 0.0
      %1491 = vmatprep.subr.mxu0 0.0
      %1492 = vmatpush1.msra.mxu0 0.0
      %1493 = vmatprep.subr.mxu0 0.0
      %1494 = vmatpush1.msra.mxu0 0.0
      %1495 = vmatprep.subr.mxu0 0.0
      %1496 = vmatpush1.msra.mxu0 0.0
      %1497 = vmatprep.subr.mxu0 0.0
      %1498 = vmatpush1.msra.mxu0 0.0
      %1499 = vmatprep.subr.mxu0 0.0
      %1500 = vmatpush1.msra.mxu0 0.0
      %1501 = vmatprep.subr.mxu0 0.0
      %1502 = vmatpush1.msra.mxu0 0.0
      %1503 = vmatprep.subr.mxu0 0.0
      %1504 = vmatpush1.msra.mxu0 0.0
      %1505 = vmatprep.subr.mxu0 0.0
      %1506 = vmatpush1.msra.mxu0 0.0
      %1507 = vmatprep.subr.mxu0 0.0
      %1508 = vmatpush1.msra.mxu0 0.0
      %1509 = vmatprep.subr.mxu0 0.0
      %1510 = vmatpush1.msra.mxu0 0.0
      %1511 = vmatprep.subr.mxu0 0.0
      %1512 = vmatpush1.msra.mxu0 0.0
      %1513 = vmatprep.subr.mxu0 0.0
      %1514 = vmatpush1.msra.mxu0 0.0
      %1515 = vmatprep.subr.mxu0 0.0
      %1516 = vmatpush1.msra.mxu0 0.0
      %1517 = vmatprep.subr.mxu0 0.0
      %1518 = vmatpush1.msra.mxu0 0.0
      %1519 = vmatprep.subr.mxu0 0.0
      %1520 = vmatpush1.msra.mxu0 0.0
      %1521 = vmatprep.subr.mxu0 0.0
      %1522 = vmatpush1.msra.mxu0 0.0
      %1523 = vmatprep.subr.mxu0 0.0
      %1524 = vmatpush1.msra.mxu0 0.0
      %1525 = vmatprep.subr.mxu0 0.0
      %1526 = vmatpush1.msra.mxu0 0.0
      %1527 = vmatprep.subr.mxu0 0.0
      %1528 = vmatpush1.msra.mxu0 0.0
      %1529 = vmatprep.subr.mxu0 0.0
      %1530 = vmatpush1.msra.mxu0 0.0
      %1531 = vmatprep.subr.mxu0 0.0
      %1532 = vmatpush1.msra.mxu0 0.0
      %1533 = vmatprep.mubr.f32.mxu0 0.0
      %1534 = vmatmul.mubr.f32.gmra.mrb[0].mxu0 %v1304
      %v1535 = vpop.f32.mrb[0].mxu0
      %v1536 = vadd.f32 0.0, %v1535
      %v1537 = vpop.f32.mrb[0].mxu0
      %1538 = vmatprep.mubr.f32.mxu0 0.0
      %1539 = vmatmul.mubr.f32.gmra.mrb[0].mxu0 %v1307
      %v1540 = vpop.f32.mrb[0].mxu0
      %v1541 = vadd.f32 0.0, %v1540
      %v1542 = vpop.f32.mrb[0].mxu0
      %1543 = vdwg.mxu0
      %v1545 = vsel %vm355, %v1536, 0
      %v1548 = vsel %vm355, %v1541, 0
      %1550 = vmatprep.subr.mxu0 0.0
      %1551 = vmatpush1.msra.mxu0 %v1376
      %1552 = vmatprep.subr.mxu0 0.0
      %1553 = vmatpush1.msra.mxu0 %v1381
      %1554 = vmatprep.subr.mxu0 0.0
      %1555 = vmatpush1.msra.mxu0 0.0
      %1556 = vmatprep.subr.mxu0 0.0
      %1557 = vmatpush1.msra.mxu0 0.0
      %1558 = vmatprep.subr.mxu0 0.0
      %1559 = vmatpush1.msra.mxu0 0.0
      %1560 = vmatprep.subr.mxu0 0.0
      %1561 = vmatpush1.msra.mxu0 0.0
      %1562 = vmatprep.subr.mxu0 0.0
      %1563 = vmatpush1.msra.mxu0 0.0
      %1564 = vmatprep.subr.mxu0 0.0
      %1565 = vmatpush1.msra.mxu0 0.0
      %1566 = vmatprep.subr.mxu0 0.0
      %1567 = vmatpush1.msra.mxu0 0.0
      %1568 = vmatprep.subr.mxu0 0.0
      %1569 = vmatpush1.msra.mxu0 0.0
      %1570 = vmatprep.subr.mxu0 0.0
      %1571 = vmatpush1.msra.mxu0 0.0
      %1572 = vmatprep.subr.mxu0 0.0
      %1573 = vmatpush1.msra.mxu0 0.0
      %1574 = vmatprep.subr.mxu0 0.0
      %1575 = vmatpush1.msra.mxu0 0.0
      %1576 = vmatprep.subr.mxu0 0.0
      %1577 = vmatpush1.msra.mxu0 0.0
      %1578 = vmatprep.subr.mxu0 0.0
      %1579 = vmatpush1.msra.mxu0 0.0
      %1580 = vmatprep.subr.mxu0 0.0
      %1581 = vmatpush1.msra.mxu0 0.0
      %1582 = vmatprep.subr.mxu0 0.0
      %1583 = vmatpush1.msra.mxu0 0.0
      %1584 = vmatprep.subr.mxu0 0.0
      %1585 = vmatpush1.msra.mxu0 0.0
      %1586 = vmatprep.subr.mxu0 0.0
      %1587 = vmatpush1.msra.mxu0 0.0
      %1588 = vmatprep.subr.mxu0 0.0
      %1589 = vmatpush1.msra.mxu0 0.0
      %1590 = vmatprep.subr.mxu0 0.0
      %1591 = vmatpush1.msra.mxu0 0.0
      %1592 = vmatprep.subr.mxu0 0.0
      %1593 = vmatpush1.msra.mxu0 0.0
      %1594 = vmatprep.subr.mxu0 0.0
      %1595 = vmatpush1.msra.mxu0 0.0
      %1596 = vmatprep.subr.mxu0 0.0
      %1597 = vmatpush1.msra.mxu0 0.0
      %1598 = vmatprep.subr.mxu0 0.0
      %1599 = vmatpush1.msra.mxu0 0.0
      %1600 = vmatprep.subr.mxu0 0.0
      %1601 = vmatpush1.msra.mxu0 0.0
      %1602 = vmatprep.subr.mxu0 0.0
      %1603 = vmatpush1.msra.mxu0 0.0
      %1604 = vmatprep.subr.mxu0 0.0
      %1605 = vmatpush1.msra.mxu0 0.0
      %1606 = vmatprep.subr.mxu0 0.0
      %1607 = vmatpush1.msra.mxu0 0.0
      %1608 = vmatprep.subr.mxu0 0.0
      %1609 = vmatpush1.msra.mxu0 0.0
      %1610 = vmatprep.subr.mxu0 0.0
      %1611 = vmatpush1.msra.mxu0 0.0
      %1612 = vmatprep.subr.mxu0 0.0
      %1613 = vmatpush1.msra.mxu0 0.0
      %1614 = vmatprep.mubr.f32.mxu0 0.0
      %1615 = vmatmul.mubr.f32.gmra.mrb[0].mxu0 %v1545
      %v1616 = vpop.f32.mrb[0].mxu0
      %v1617 = vadd.f32 0.0, %v1616
      %v1618 = vpop.f32.mrb[0].mxu0
      %1619 = vmatprep.mubr.f32.mxu0 0.0
      %1620 = vmatmul.mubr.f32.gmra.mrb[0].mxu0 %v1548
      %v1621 = vpop.f32.mrb[0].mxu0
      %v1622 = vadd.f32 0.0, %v1621
      %v1623 = vpop.f32.mrb[0].mxu0
      %1624 = vdwg.mxu0
      %v1625 = vld [vmem:[%s6] sm:$0xff]
      %v1626 = vld [vmem:[%s6 + $0x8] sm:$0xff]
      %v1627 = vld [vmem:[%s6 + $0x10] sm:$0xff]
      %v1628 = vld [vmem:[%s6 + $0x18] sm:$0xff]
      %v1629 = vld [vmem:[%s6 + $0x20] sm:$0xff]
      %v1630 = vld [vmem:[%s6 + $0x28] sm:$0xff]
      %v1631 = vld [vmem:[%s6 + $0x30] sm:$0xff]
      %v1632 = vld [vmem:[%s6 + $0x38] sm:$0xff]
      %v1634 = vsel %vm1036, %v1617, 0
      %v1637 = vsel %vm1036, %v1622, 0
      %1639 = vmatprep.subr.mxu0 0.0
      %1640 = vmatpush1.msra.mxu0 %v1625
      %1641 = vmatprep.subr.mxu0 0.0
      %1642 = vmatpush1.msra.mxu0 %v1626
      %1643 = vmatprep.subr.mxu0 0.0
      %1644 = vmatpush1.msra.mxu0 %v1627
      %1645 = vmatprep.subr.mxu0 0.0
      %1646 = vmatpush1.msra.mxu0 %v1628
      %1647 = vmatprep.subr.mxu0 0.0
      %1648 = vmatpush1.msra.mxu0 %v1629
      %1649 = vmatprep.subr.mxu0 0.0
      %1650 = vmatpush1.msra.mxu0 %v1630
      %1651 = vmatprep.subr.mxu0 0.0
      %1652 = vmatpush1.msra.mxu0 %v1631
      %1653 = vmatprep.subr.mxu0 0.0
      %1654 = vmatpush1.msra.mxu0 %v1632
      %1655 = vmatprep.subr.mxu0 0.0
      %1656 = vmatpush1.msra.mxu0 0.0
      %1657 = vmatprep.subr.mxu0 0.0
      %1658 = vmatpush1.msra.mxu0 0.0
      %1659 = vmatprep.subr.mxu0 0.0
      %1660 = vmatpush1.msra.mxu0 0.0
      %1661 = vmatprep.subr.mxu0 0.0
      %1662 = vmatpush1.msra.mxu0 0.0
      %1663 = vmatprep.subr.mxu0 0.0
      %1664 = vmatpush1.msra.mxu0 0.0
      %1665 = vmatprep.subr.mxu0 0.0
      %1666 = vmatpush1.msra.mxu0 0.0
      %1667 = vmatprep.subr.mxu0 0.0
      %1668 = vmatpush1.msra.mxu0 0.0
      %1669 = vmatprep.subr.mxu0 0.0
      %1670 = vmatpush1.msra.mxu0 0.0
      %1671 = vmatprep.subr.mxu0 0.0
      %1672 = vmatpush1.msra.mxu0 0.0
      %1673 = vmatprep.subr.mxu0 0.0
      %1674 = vmatpush1.msra.mxu0 0.0
      %1675 = vmatprep.subr.mxu0 0.0
      %1676 = vmatpush1.msra.mxu0 0.0
      %1677 = vmatprep.subr.mxu0 0.0
      %1678 = vmatpush1.msra.mxu0 0.0
      %1679 = vmatprep.subr.mxu0 0.0
      %1680 = vmatpush1.msra.mxu0 0.0
      %1681 = vmatprep.subr.mxu0 0.0
      %1682 = vmatpush1.msra.mxu0 0.0
      %1683 = vmatprep.subr.mxu0 0.0
      %1684 = vmatpush1.msra.mxu0 0.0
      %1685 = vmatprep.subr.mxu0 0.0
      %1686 = vmatpush1.msra.mxu0 0.0
      %1687 = vmatprep.subr.mxu0 0.0
      %1688 = vmatpush1.msra.mxu0 0.0
      %1689 = vmatprep.subr.mxu0 0.0
      %1690 = vmatpush1.msra.mxu0 0.0
      %1691 = vmatprep.subr.mxu0 0.0
      %1692 = vmatpush1.msra.mxu0 0.0
      %1693 = vmatprep.subr.mxu0 0.0
      %1694 = vmatpush1.msra.mxu0 0.0
      %1695 = vmatprep.subr.mxu0 0.0
      %1696 = vmatpush1.msra.mxu0 0.0
      %1697 = vmatprep.subr.mxu0 0.0
      %1698 = vmatpush1.msra.mxu0 0.0
      %1699 = vmatprep.subr.mxu0 0.0
      %1700 = vmatpush1.msra.mxu0 0.0
      %1701 = vmatprep.subr.mxu0 0.0
      %1702 = vmatpush1.msra.mxu0 0.0
      %1703 = vmatprep.mubr.f32.mxu0 0.0
      %1704 = vmatmul.mubr.f32.gmra.mrb[0].mxu0 %v1634
      %v1705 = vpop.f32.mrb[0].mxu0
      %v1706 = vadd.f32 0.0, %v1705
      %v1707 = vpop.f32.mrb[0].mxu0
      %1708 = vmatprep.mubr.f32.mxu0 0.0
      %1709 = vmatmul.mubr.f32.gmra.mrb[0].mxu0 %v1637
      %v1710 = vpop.f32.mrb[0].mxu0
      %v1711 = vadd.f32 0.0, %v1710
      %v1712 = vpop.f32.mrb[0].mxu0
      %1713 = vdwg.mxu0
      %v1714 = vsel %vm1036, %v1706, 0.0
      %v1715 = vsel %vm1036, %v1711, 0.0
      %v1716 = vadd.f32 %v1714, %v1715
      %v1717 = vrot.slane %v1716, 4
      %v1718 = vadd.f32 %v1716, %v1717
      %v1719 = vrot.slane %v1718, 2
      %v1720 = vadd.f32 %v1718, %v1719
      %v1721 = vrot.slane %v1720, 1
      %v1722 = vadd.f32 %v1720, %v1721
      %v1723 = vld [vmem:[%s7] sm:$0x1]
      %v1724 = vmul.f32 %v1722, %v1723
      %vm1725 = vcmask 516096
      %v1726 = vsel %vm1725, %v1724, 0.0
      %1727 = vadd.xlane.f32.xlu0 %v1726
      %v1728 = vpop.xlane.xlu0 %1727
      %v1729 = vld [vmem:[#allocation2] sm:$0x1]
      %v1730 = vadd.f32 %v1728, %v1729
      %1732 = vset.pattern.permute.xlu0 0
      %1733 = vperm.xlu0 %1732, %v1730
      %v1734 = vpop.permute.xlu0 %1733
      %1736 = vst [vmem:[%s350] sm:$0x1] %v1734
      %p1737 = scmp.lt.s32.totalorder %s22, 1
      %s1738 = scalar_select %p1737, %s22, 1
      %s1739 = scalar_lea.vmem %s9, %s1738
      // Predicated region
      $region57: #{toy_diffpool_forward.1} parent=55 // pred_check
        %p1740 = pneg %p239
      $region58: #{toy_diffpool_forward.1} parent=55 // pred_check_branch
        %1742 = sbr.rel (%p1740) target = $region60
      $region59: #{toy_diffpool_forward.1} parent=55 // pred_region
        _
      $region60: #{toy_diffpool_forward.1} parent=55 // pred_fallthru
        _
    $region56: #{toy_diffpool_forward.1} parent=5 // pred_fallthru
      _
    %p1743 = scmp.le.s32.totalorder 2, %s17
    // Predicated region
    $region61: #{toy_diffpool_forward.1} parent=5 // pred_check
      %p1744 = pneg %p1743
    $region62: #{toy_diffpool_forward.1} parent=5 // pred_check_branch
      %1746 = sbr.rel (%p1744) target = $region64
    $region63: #{toy_diffpool_forward.1} parent=5 // pred_region
      %s1747 = ssub.s32 %s17, 2
      // Predicated region
      $region65: #{toy_diffpool_forward.1} parent=63 // pred_check
        %p1748 = pneg %p245
      $region66: #{toy_diffpool_forward.1} parent=63 // pred_check_branch
        %1750 = sbr.rel (%p1748) target = $region68
      $region67: #{toy_diffpool_forward.1} parent=63 // pred_region
        %p1751 = scmp.lt.s32.totalorder %s23, 1
        %s1752 = scalar_select %p1751, %s23, 1
        %s1753 = scalar_lea.vmem %s9, %s1752
      $region68: #{toy_diffpool_forward.1} parent=63 // pred_fallthru
        _
    $region64: #{toy_diffpool_forward.1} parent=5 // pred_fallthru
      _
  $region6: #{toy_diffpool_forward.1} parent=0 // loop_footer
    %s21 = sadd.s32 1, %s17
  $region7: #{toy_diffpool_forward.1} parent=0 // loop_footer_branch
    %16 = sbr.rel target = $region3
  $region8: #{toy_diffpool_forward.1} parent=0 // loop_exit
    _

</llo_original>
